<compile_context>
chip_gen: v7x
topology: tpu7x:2x2x1
jax: 0.10.0
libtpu: 0.0.40
codegen_flags: <defaults>
</compile_context>

<pallas_src>
import jax
import jax.numpy as jnp
from jax import lax
from jax.experimental import pallas as pl
from jax.experimental.pallas import tpu as pltpu


def bottleneck_kernel(x_ref, xt_ref, xb_ref,
                      w1_ref, b1_ref, w2_ref, b2_ref, w3_ref, b3_ref,
                      out_ref, pad_ref):
    # x_ref:   (1, TH, W, Cin)  current row tile
    # xt_ref:  (1, 1, W, Cin)   row just above the tile (clamped at border)
    # xb_ref:  (1, 1, W, Cin)   row just below the tile (clamped at border)
    # w1_ref:  (Cin, width_p)       bf16, bn1 folded     b1: (1, width_p) f32
    # w2_ref:  (9*width_p, width_p) bf16, bn2 folded     b2: (1, width_p) f32
    # w3_ref:  (width_p, Cout)      bf16, bn3 folded     b3: (1, Cout)    f32
    # out_ref: (1, TH, W, Cout)
    # pad_ref: (TH+2, W+2, width_p) f32 VMEM scratch — zero-padded conv2 input
    TH = x_ref.shape[1]
    W = x_ref.shape[2]
    Cin = x_ref.shape[3]
    width_p = w1_ref.shape[1]
    Cout = w3_ref.shape[1]

    h = pl.program_id(1)
    nh = pl.num_programs(1)
    f32 = jnp.float32
    bf16 = jnp.bfloat16

    # Residual path stays in f32.
    xm_f32 = x_ref[0].astype(f32).reshape(TH * W, Cin)

    # ---- conv1 (1x1) + bn1 + relu: ONE matmul over halo|tile|halo rows -----
    x_stack = jnp.concatenate(
        [xt_ref[0, 0].astype(bf16),           # (W, Cin)    top halo row
         xm_f32.astype(bf16),                 # (TH*W, Cin) tile rows
         xb_ref[0, 0].astype(bf16)],          # (W, Cin)    bottom halo row
        axis=0)                               # ((TH+2)*W, Cin)
    o1 = jnp.dot(x_stack, w1_ref[...], preferred_element_type=f32)
    o1 = jnp.maximum(o1 + b1_ref[...], 0.0)
    # conv2's padding at the true image border must be exact zeros of o1
    # (the halo blocks were clamped, not zero-filled).
    rows = lax.broadcasted_iota(jnp.int32, ((TH + 2) * W, 1), 0)
    kill = ((h == 0) & (rows < W)) | ((h == nh - 1) & (rows >= (TH + 1) * W))
    o1 = jnp.where(kill, 0.0, o1)

    # ---- zero-padded conv2 input built in persistent VMEM scratch ----------
    zcol = jnp.zeros((TH + 2, 1, width_p), f32)
    pad_ref[:, 0:1, :] = zcol                  # left halo column
    pad_ref[:, W + 1:W + 2, :] = zcol          # right halo column
    pad_ref[:, 1:W + 1, :] = o1.reshape(TH + 2, W, width_p)

    # ---- conv2 (3x3, pad=1, stride=1) + bn2 + relu: one im2col matmul ------
    # TODO(synk): keep the scratch (and taps) in bf16 once packed-sublane
    # offset stores are verified on the target toolchain; halves tap traffic.
    taps = [pad_ref[dy:dy + TH, dx:dx + W, :].astype(bf16).reshape(TH * W, width_p)
            for dy in range(3) for dx in range(3)]
    patch = jnp.concatenate(taps, axis=-1)     # (TH*W, 9*width_p), lane-aligned
    o2 = jnp.dot(patch, w2_ref[...], preferred_element_type=f32)
    o2 = jnp.maximum(o2 + b2_ref[...], 0.0)

    # ---- conv3 (1x1) + bn3 + residual + relu (f32 epilogue) ----------------
    o3 = jnp.dot(o2.astype(bf16), w3_ref[...], preferred_element_type=f32)
    o3 = jnp.maximum(o3 + b3_ref[...] + xm_f32, 0.0)   # identity: Cin == Cout
    out_ref[0] = o3.reshape(TH, W, Cout).astype(out_ref.dtype)


def _default_row_tile(N, H):
    """Largest divisor of H that still yields >= 4 grid steps (v7x dual-TC)."""
    for cand in range(H, 0, -1):
        if H % cand == 0 and N * (H // cand) >= 4:
            return cand
    return 1


def bottleneck_pallas(x_nhwc, w1, b1, w2, b2, w3, b3, *, row_tile=None,
                      out_dtype=None, vmem_limit_bytes=None):
    """x_nhwc: (N,H,W,Cin). Weights from prepare_params(): bf16 matrices with
    BN scales folded and width zero-padded to a multiple of 128 lanes."""
    N, H, W, Cin = x_nhwc.shape
    width_p = w1.shape[1]
    Cout = w3.shape[1]
    assert Cin == Cout, "identity path requires Cin == Cout (downsample=None)"

    TH = row_tile if row_tile is not None else _default_row_tile(N, H)
    assert H % TH == 0, "row_tile must divide H"
    # TODO(synk): support H % TH != 0 (7x7 final stage) via pl.cdiv + row masks.
    nh = H // TH
    out_dtype = x_nhwc.dtype if out_dtype is None else out_dtype

    # Advisory cost estimate (MXU flops + f32 activation / bf16 weight bytes).
    w_elems = Cin * width_p + 9 * width_p * width_p + width_p * Cout
    flops = (2 * N * (H + 2 * nh) * W * Cin * width_p
             + 2 * N * H * W * (9 * width_p * width_p + width_p * Cout))
    bytes_accessed = (4 * N * H * W * (Cin + Cout)       # x in, out
                      + 4 * N * nh * 2 * W * Cin         # halo row re-reads
                      + 2 * w_elems                      # bf16 weights
                      + 4 * (2 * width_p + Cout))        # f32 biases
    cost = pl.CostEstimate(flops=flops, transcendentals=0,
                           bytes_accessed=bytes_accessed)

    wmap = lambda n, h: (0, 0)
    in_specs = [
        # current row tile
        pl.BlockSpec((1, TH, W, Cin), lambda n, h: (n, h, 0, 0)),
        # 1-row top/bottom halos (clamped; masked to zero in-kernel at border)
        pl.BlockSpec((1, 1, W, Cin),
                     lambda n, h: (n, jnp.maximum(h * TH - 1, 0), 0, 0)),
        pl.BlockSpec((1, 1, W, Cin),
                     lambda n, h: (n, jnp.minimum((h + 1) * TH, H - 1), 0, 0)),
        pl.BlockSpec((Cin, width_p), wmap),          # w1 (bn1 folded, bf16)
        pl.BlockSpec((1, width_p), wmap),            # b1 (f32)
        pl.BlockSpec((9 * width_p, width_p), wmap),  # w2 (bn2 folded, bf16)
        pl.BlockSpec((1, width_p), wmap),            # b2 (f32)
        pl.BlockSpec((width_p, Cout), wmap),         # w3 (bn3 folded, bf16)
        pl.BlockSpec((1, Cout), wmap),               # b3 (f32)
    ]

    return pl.pallas_call(
        bottleneck_kernel,
        out_shape=jax.ShapeDtypeStruct((N, H, W, Cout), out_dtype),
        grid=(N, nh),
        in_specs=in_specs,
        out_specs=pl.BlockSpec((1, TH, W, Cout), lambda n, h: (n, h, 0, 0)),
        scratch_shapes=[pltpu.VMEM((TH + 2, W + 2, width_p), jnp.float32)],
        compiler_params=pltpu.CompilerParams(
            dimension_semantics=("parallel", "parallel"),
            vmem_limit_bytes=vmem_limit_bytes),
        cost_estimate=cost,
    )(x_nhwc, x_nhwc, x_nhwc, w1, b1, w2, b2, w3, b3)


def fold_bn(gamma, beta, mean, var, eps=1e-5):
    scale = gamma / jnp.sqrt(var + eps)
    bias = beta - mean * scale
    return scale[None, :], bias[None, :]


def prepare_params(w1_hwio, s1, b1, w2_hwio, s2, b2, w3_hwio, s3, b3):
    """Fold BN scales into conv weights, zero-pad width to a multiple of 128
    lanes, and cast the matmul operands to bf16 (biases stay f32)."""
    width = w1_hwio.shape[3]
    width_p = -(-width // 128) * 128
    pw = width_p - width

    w1_mat = jnp.pad(w1_hwio[0, 0] * s1, ((0, 0), (0, pw)))          # (Cin, width_p)
    w2_mat = jnp.pad(w2_hwio * s2, ((0, 0), (0, 0), (0, pw), (0, pw)))
    w2_mat = w2_mat.reshape(9 * width_p, width_p)                     # (dy,dx,cin) rows
    w3_mat = jnp.pad(w3_hwio[0, 0] * s3, ((0, pw), (0, 0)))          # (width_p, Cout)

    b1_p = jnp.pad(b1, ((0, 0), (0, pw)))
    b2_p = jnp.pad(b2, ((0, 0), (0, pw)))
    return (w1_mat.astype(jnp.bfloat16), b1_p,
            w2_mat.astype(jnp.bfloat16), b2_p,
            w3_mat.astype(jnp.bfloat16), b3)


def ref_forward_nhwc(x, w1_hwio, s1, b1, w2_hwio, s2, b2, w3_hwio, s3, b3):
    dn = ("NHWC", "HWIO", "NHWC")
    hp = lax.Precision.HIGHEST
    o = lax.conv_general_dilated(x, w1_hwio, (1, 1), "VALID",
                                 dimension_numbers=dn, precision=hp)
    o = jnp.maximum(o * s1 + b1, 0.0)
    o = lax.conv_general_dilated(o, w2_hwio, (1, 1), [(1, 1), (1, 1)],
                                 dimension_numbers=dn, precision=hp)
    o = jnp.maximum(o * s2 + b2, 0.0)
    o = lax.conv_general_dilated(o, w3_hwio, (1, 1), "VALID",
                                 dimension_numbers=dn, precision=hp)
    o = o * s3 + b3
    return jnp.maximum(o + x, 0.0)


if __name__ == "__main__":
    # Bottleneck(inplanes=128, planes=32): width=32 (padded to 128 lanes in the
    # kernel), out channels = 32*4 = 128 so the identity path is valid with
    # downsample=None and every channel store is lane-dense.
    N, H, W = 2, 8, 8
    inplanes, planes = 128, 32
    width = planes
    cout = planes * 4

    key = jax.random.PRNGKey(0)
    ks = jax.random.split(key, 8)

    # Input in PyTorch NCHW, converted to NHWC for the kernel.
    x_nchw = jax.random.normal(ks[0], (N, inplanes, H, W), jnp.float32)
    x_nhwc = jnp.transpose(x_nchw, (0, 2, 3, 1))

    # Conv weights in PyTorch OIHW layout.
    w1_oihw = 0.05 * jax.random.normal(ks[1], (width, inplanes, 1, 1), jnp.float32)
    w2_oihw = 0.05 * jax.random.normal(ks[2], (width, width, 3, 3), jnp.float32)
    w3_oihw = 0.05 * jax.random.normal(ks[3], (cout, width, 1, 1), jnp.float32)

    # Deterministic (inference-mode) BatchNorm parameters -> scale/bias.
    def bn_params(k, c):
        kk = jax.random.split(k, 4)
        gamma = 1.0 + 0.1 * jax.random.normal(kk[0], (c,), jnp.float32)
        beta = 0.1 * jax.random.normal(kk[1], (c,), jnp.float32)
        mean = 0.1 * jax.random.normal(kk[2], (c,), jnp.float32)
        var = jnp.abs(1.0 + 0.1 * jax.random.normal(kk[3], (c,), jnp.float32))
        return fold_bn(gamma, beta, mean, var)

    s1, b1 = bn_params(ks[4], width)
    s2, b2 = bn_params(ks[5], width)
    s3, b3 = bn_params(ks[6], cout)

    # HWIO forms (shared by kernel weight prep and pure-JAX reference).
    w1_hwio = jnp.transpose(w1_oihw, (2, 3, 1, 0))      # (1,1,Cin,width)
    w2_hwio = jnp.transpose(w2_oihw, (2, 3, 1, 0))      # (3,3,width,width)
    w3_hwio = jnp.transpose(w3_oihw, (2, 3, 1, 0))      # (1,1,width,Cout)

    w1m, b1p, w2m, b2p, w3m, b3p = prepare_params(
        w1_hwio, s1, b1, w2_hwio, s2, b2, w3_hwio, s3, b3)

    out_nhwc = bottleneck_pallas(x_nhwc, w1m, b1p, w2m, b2p, w3m, b3p)
    out_nhwc = jax.block_until_ready(out_nhwc)

    # Pure-JAX f32 reference (unfolded weights + BN scale/bias). The kernel
    # uses bf16 MXU operands, so the tolerance is loosened accordingly.
    ref = ref_forward_nhwc(x_nhwc, w1_hwio, s1, b1, w2_hwio, s2, b2,
                           w3_hwio, s3, b3)
    max_err = float(jnp.max(jnp.abs(out_nhwc - ref)))
    assert jnp.allclose(out_nhwc, ref, atol=1e-1, rtol=1e-1), max_err

    # Convert back to NCHW to mirror the PyTorch output convention.
    out_nchw = jnp.transpose(out_nhwc, (0, 3, 1, 2))
    assert out_nchw.shape == (N, cout, H, W)

    print("KERNEL_OK")
</pallas_src>

<mosaic_0001>
module attributes {stable_mosaic.version = 11 : i64} {
  func.func @bottleneck_kernel(%arg0: i32, %arg1: i32, %arg2: memref<1x4x8x128xf32, #tpu.memory_space<vmem>>, %arg3: memref<1x1x8x128xf32, #tpu.memory_space<vmem>>, %arg4: memref<1x1x8x128xf32, #tpu.memory_space<vmem>>, %arg5: memref<128x128xbf16, #tpu.memory_space<vmem>>, %arg6: memref<1x128xf32, #tpu.memory_space<vmem>>, %arg7: memref<1152x128xbf16, #tpu.memory_space<vmem>>, %arg8: memref<1x128xf32, #tpu.memory_space<vmem>>, %arg9: memref<128x128xbf16, #tpu.memory_space<vmem>>, %arg10: memref<1x128xf32, #tpu.memory_space<vmem>>, %arg11: memref<1x4x8x128xf32, #tpu.memory_space<vmem>>, %arg12: memref<6x10x128xf32, #tpu.memory_space<vmem>>) attributes {dimension_semantics = [#tpu.dimension_semantics<parallel>, #tpu.dimension_semantics<parallel>], iteration_bounds = array<i64: 2, 2>, scalar_prefetch = 0 : i64, scratch_operands = 1 : i64, tpu.core_type = #tpu.core_type<tc>, window_params = [{transform_indices = @transform_0, window_bounds = array<i64: 1, 4, 8, 128>}, {transform_indices = @transform_1, window_bounds = array<i64: 1, 1, 8, 128>}, {transform_indices = @transform_2, window_bounds = array<i64: 1, 1, 8, 128>}, {pipeline_mode = #tpu.pipeline_mode<synchronous>, transform_indices = @transform_3, window_bounds = array<i64: 128, 128>}, {pipeline_mode = #tpu.pipeline_mode<synchronous>, transform_indices = @transform_4, window_bounds = array<i64: 1, 128>}, {pipeline_mode = #tpu.pipeline_mode<synchronous>, transform_indices = @transform_5, window_bounds = array<i64: 1152, 128>}, {pipeline_mode = #tpu.pipeline_mode<synchronous>, transform_indices = @transform_6, window_bounds = array<i64: 1, 128>}, {pipeline_mode = #tpu.pipeline_mode<synchronous>, transform_indices = @transform_7, window_bounds = array<i64: 128, 128>}, {pipeline_mode = #tpu.pipeline_mode<synchronous>, transform_indices = @transform_8, window_bounds = array<i64: 1, 128>}, {transform_indices = @transform_9, window_bounds = array<i64: 1, 4, 8, 128>}]} {
    %c0 = arith.constant 0 : index
    %c0_0 = arith.constant 0 : index
    %c0_1 = arith.constant 0 : index
    %c0_2 = arith.constant 0 : index
    %0 = vector.load %arg2[%c0, %c0_0, %c0_1, %c0_2] : memref<1x4x8x128xf32, #tpu.memory_space<vmem>>, vector<1x4x8x128xf32>
    %1 = vector.shape_cast %0 : vector<1x4x8x128xf32> to vector<4x8x128xf32>
    %2 = vector.shape_cast %1 : vector<4x8x128xf32> to vector<32x128xf32>
    %c0_3 = arith.constant 0 : index
    %c0_4 = arith.constant 0 : index
    %c0_5 = arith.constant 0 : index
    %c0_6 = arith.constant 0 : index
    %3 = vector.load %arg3[%c0_3, %c0_4, %c0_5, %c0_6] : memref<1x1x8x128xf32, #tpu.memory_space<vmem>>, vector<1x1x8x128xf32>
    %4 = vector.shape_cast %3 : vector<1x1x8x128xf32> to vector<8x128xf32>
    %5 = arith.truncf %4 : vector<8x128xf32> to vector<8x128xbf16>
    %6 = arith.truncf %2 : vector<32x128xf32> to vector<32x128xbf16>
    %c0_7 = arith.constant 0 : index
    %c0_8 = arith.constant 0 : index
    %c0_9 = arith.constant 0 : index
    %c0_10 = arith.constant 0 : index
    %7 = vector.load %arg4[%c0_7, %c0_8, %c0_9, %c0_10] : memref<1x1x8x128xf32, #tpu.memory_space<vmem>>, vector<1x1x8x128xf32>
    %8 = vector.shape_cast %7 : vector<1x1x8x128xf32> to vector<8x128xf32>
    %9 = arith.truncf %8 : vector<8x128xf32> to vector<8x128xbf16>
    %10 = tpu.concatenate %5, %6, %9 in 0 : vector<8x128xbf16>, vector<32x128xbf16>, vector<8x128xbf16> -> vector<48x128xbf16>
    %c0_11 = arith.constant 0 : index
    %c0_12 = arith.constant 0 : index
    %11 = vector.load %arg5[%c0_11, %c0_12] : memref<128x128xbf16, #tpu.memory_space<vmem>>, vector<128x128xbf16>
    %cst = arith.constant dense<0.000000e+00> : vector<48x128xf32>
    %12 = tpu.matmul %10, %11, %cst {dimension_numbers = #tpu.dot_dimension_numbers<[1], [0], [0], [1], [0, 0, 1, 1], [], []>} : vector<48x128xbf16>, vector<128x128xbf16>, vector<48x128xf32> -> vector<48x128xf32>
    %c0_13 = arith.constant 0 : index
    %c0_14 = arith.constant 0 : index
    %13 = vector.load %arg6[%c0_13, %c0_14] : memref<1x128xf32, #tpu.memory_space<vmem>>, vector<1x128xf32>
    %14 = vector.broadcast %13 : vector<1x128xf32> to vector<48x128xf32>
    %15 = arith.addf %12, %14 : vector<48x128xf32>
    %cst_15 = arith.constant 0.000000e+00 : f32
    %16 = vector.broadcast %cst_15 : f32 to vector<48x128xf32>
    %17 = arith.maximumf %15, %16 : vector<48x128xf32>
    %18 = tpu.iota {dimensions = array<i32: 0>} : vector<48x1xi32>
    %c0_i32 = arith.constant 0 : i32
    %19 = arith.cmpi eq, %arg1, %c0_i32 : i32
    %c8_i32 = arith.constant 8 : i32
    %20 = vector.broadcast %c8_i32 : i32 to vector<48x1xi32>
    %21 = arith.cmpi slt, %18, %20 : vector<48x1xi32>
    %22 = vector.broadcast %19 : i1 to vector<48x1xi1>
    %23 = arith.andi %22, %21 : vector<48x1xi1>
    %c1_i32 = arith.constant 1 : i32
    %24 = arith.cmpi eq, %arg1, %c1_i32 : i32
    %c40_i32 = arith.constant 40 : i32
    %25 = vector.broadcast %c40_i32 : i32 to vector<48x1xi32>
    %26 = arith.cmpi sge, %18, %25 : vector<48x1xi32>
    %27 = vector.broadcast %24 : i1 to vector<48x1xi1>
    %28 = arith.andi %27, %26 : vector<48x1xi1>
    %29 = arith.ori %23, %28 : vector<48x1xi1>
    %cst_16 = arith.constant 0.000000e+00 : f32
    %30 = vector.shape_cast %29 : vector<48x1xi1> to vector<48x1xi1>
    %31 = vector.broadcast %30 : vector<48x1xi1> to vector<48x128xi1>
    %32 = vector.broadcast %cst_16 : f32 to vector<48x128xf32>
    %33 = arith.select %31, %32, %17 : vector<48x128xi1>, vector<48x128xf32>
    %cst_17 = arith.constant 0.000000e+00 : f32
    %34 = vector.broadcast %cst_17 : f32 to vector<6x1x128xf32>
    %c0_18 = arith.constant 0 : index
    %c0_19 = arith.constant 0 : index
    %c0_20 = arith.constant 0 : index
    %35 = vector.load %arg12[%c0_18, %c0_19, %c0_20] : memref<6x10x128xf32, #tpu.memory_space<vmem>>, vector<6x1x128xf32>
    tpu.vector_store %arg12[%c0_18, %c0_19, %c0_20], %34 {strides = array<i32>} : memref<6x10x128xf32, #tpu.memory_space<vmem>>, vector<6x1x128xf32>,
    %c0_21 = arith.constant 0 : index
    %c9 = arith.constant 9 : index
    %c0_22 = arith.constant 0 : index
    %36 = vector.load %arg12[%c0_21, %c9, %c0_22] : memref<6x10x128xf32, #tpu.memory_space<vmem>>, vector<6x1x128xf32>
    tpu.vector_store %arg12[%c0_21, %c9, %c0_22], %34 {strides = array<i32>} : memref<6x10x128xf32, #tpu.memory_space<vmem>>, vector<6x1x128xf32>,
    %37 = vector.shape_cast %33 : vector<48x128xf32> to vector<6x8x128xf32>
    %c0_23 = arith.constant 0 : index
    %c1 = arith.constant 1 : index
    %c0_24 = arith.constant 0 : index
    %38 = vector.load %arg12[%c0_23, %c1, %c0_24] : memref<6x10x128xf32, #tpu.memory_space<vmem>>, vector<6x8x128xf32>
    tpu.vector_store %arg12[%c0_23, %c1, %c0_24], %37 {strides = array<i32>} : memref<6x10x128xf32, #tpu.memory_space<vmem>>, vector<6x8x128xf32>,
    %c0_25 = arith.constant 0 : index
    %c0_26 = arith.constant 0 : index
    %c0_27 = arith.constant 0 : index
    %39 = vector.load %arg12[%c0_25, %c0_26, %c0_27] : memref<6x10x128xf32, #tpu.memory_space<vmem>>, vector<4x8x128xf32>
    %40 = arith.truncf %39 : vector<4x8x128xf32> to vector<4x8x128xbf16>
    %41 = vector.shape_cast %40 : vector<4x8x128xbf16> to vector<32x128xbf16>
    %c0_28 = arith.constant 0 : index
    %c1_29 = arith.constant 1 : index
    %c0_30 = arith.constant 0 : index
    %42 = vector.load %arg12[%c0_28, %c1_29, %c0_30] : memref<6x10x128xf32, #tpu.memory_space<vmem>>, vector<4x8x128xf32>
    %43 = arith.truncf %42 : vector<4x8x128xf32> to vector<4x8x128xbf16>
    %44 = vector.shape_cast %43 : vector<4x8x128xbf16> to vector<32x128xbf16>
    %c0_31 = arith.constant 0 : index
    %c2 = arith.constant 2 : index
    %c0_32 = arith.constant 0 : index
    %45 = vector.load %arg12[%c0_31, %c2, %c0_32] : memref<6x10x128xf32, #tpu.memory_space<vmem>>, vector<4x8x128xf32>
    %46 = arith.truncf %45 : vector<4x8x128xf32> to vector<4x8x128xbf16>
    %47 = vector.shape_cast %46 : vector<4x8x128xbf16> to vector<32x128xbf16>
    %c1_33 = arith.constant 1 : index
    %c0_34 = arith.constant 0 : index
    %c0_35 = arith.constant 0 : index
    %48 = vector.load %arg12[%c1_33, %c0_34, %c0_35] : memref<6x10x128xf32, #tpu.memory_space<vmem>>, vector<4x8x128xf32>
    %49 = arith.truncf %48 : vector<4x8x128xf32> to vector<4x8x128xbf16>
    %50 = vector.shape_cast %49 : vector<4x8x128xbf16> to vector<32x128xbf16>
    %c1_36 = arith.constant 1 : index
    %c1_37 = arith.constant 1 : index
    %c0_38 = arith.constant 0 : index
    %51 = vector.load %arg12[%c1_36, %c1_37, %c0_38] : memref<6x10x128xf32, #tpu.memory_space<vmem>>, vector<4x8x128xf32>
    %52 = arith.truncf %51 : vector<4x8x128xf32> to vector<4x8x128xbf16>
    %53 = vector.shape_cast %52 : vector<4x8x128xbf16> to vector<32x128xbf16>
    %c1_39 = arith.constant 1 : index
    %c2_40 = arith.constant 2 : index
    %c0_41 = arith.constant 0 : index
    %54 = vector.load %arg12[%c1_39, %c2_40, %c0_41] : memref<6x10x128xf32, #tpu.memory_space<vmem>>, vector<4x8x128xf32>
    %55 = arith.truncf %54 : vector<4x8x128xf32> to vector<4x8x128xbf16>
    %56 = vector.shape_cast %55 : vector<4x8x128xbf16> to vector<32x128xbf16>
    %c2_42 = arith.constant 2 : index
    %c0_43 = arith.constant 0 : index
    %c0_44 = arith.constant 0 : index
    %57 = vector.load %arg12[%c2_42, %c0_43, %c0_44] : memref<6x10x128xf32, #tpu.memory_space<vmem>>, vector<4x8x128xf32>
    %58 = arith.truncf %57 : vector<4x8x128xf32> to vector<4x8x128xbf16>
    %59 = vector.shape_cast %58 : vector<4x8x128xbf16> to vector<32x128xbf16>
    %c2_45 = arith.constant 2 : index
    %c1_46 = arith.constant 1 : index
    %c0_47 = arith.constant 0 : index
    %60 = vector.load %arg12[%c2_45, %c1_46, %c0_47] : memref<6x10x128xf32, #tpu.memory_space<vmem>>, vector<4x8x128xf32>
    %61 = arith.truncf %60 : vector<4x8x128xf32> to vector<4x8x128xbf16>
    %62 = vector.shape_cast %61 : vector<4x8x128xbf16> to vector<32x128xbf16>
    %c2_48 = arith.constant 2 : index
    %c2_49 = arith.constant 2 : index
    %c0_50 = arith.constant 0 : index
    %63 = vector.load %arg12[%c2_48, %c2_49, %c0_50] : memref<6x10x128xf32, #tpu.memory_space<vmem>>, vector<4x8x128xf32>
    %64 = arith.truncf %63 : vector<4x8x128xf32> to vector<4x8x128xbf16>
    %65 = vector.shape_cast %64 : vector<4x8x128xbf16> to vector<32x128xbf16>
    %66 = tpu.concatenate %41, %44, %47, %50, %53, %56, %59, %62, %65 in 1 : vector<32x128xbf16>, vector<32x128xbf16>, vector<32x128xbf16>, vector<32x128xbf16>, vector<32x128xbf16>, vector<32x128xbf16>, vector<32x128xbf16>, vector<32x128xbf16>, vector<32x128xbf16> -> vector<32x1152xbf16>
    %c0_51 = arith.constant 0 : index
    %c0_52 = arith.constant 0 : index
    %67 = vector.load %arg7[%c0_51, %c0_52] : memref<1152x128xbf16, #tpu.memory_space<vmem>>, vector<1152x128xbf16>
    %cst_53 = arith.constant dense<0.000000e+00> : vector<32x128xf32>
    %68 = tpu.matmul %66, %67, %cst_53 {dimension_numbers = #tpu.dot_dimension_numbers<[1], [0], [0], [1], [0, 0, 1, 1], [], []>} : vector<32x1152xbf16>, vector<1152x128xbf16>, vector<32x128xf32> -> vector<32x128xf32>
    %c0_54 = arith.constant 0 : index
    %c0_55 = arith.constant 0 : index
    %69 = vector.load %arg8[%c0_54, %c0_55] : memref<1x128xf32, #tpu.memory_space<vmem>>, vector<1x128xf32>
    %70 = vector.broadcast %69 : vector<1x128xf32> to vector<32x128xf32>
    %71 = arith.addf %68, %70 : vector<32x128xf32>
    %cst_56 = arith.constant 0.000000e+00 : f32
    %72 = vector.broadcast %cst_56 : f32 to vector<32x128xf32>
    %73 = arith.maximumf %71, %72 : vector<32x128xf32>
    %74 = arith.truncf %73 : vector<32x128xf32> to vector<32x128xbf16>
    %c0_57 = arith.constant 0 : index
    %c0_58 = arith.constant 0 : index
    %75 = vector.load %arg9[%c0_57, %c0_58] : memref<128x128xbf16, #tpu.memory_space<vmem>>, vector<128x128xbf16>
    %cst_59 = arith.constant dense<0.000000e+00> : vector<32x128xf32>
    %76 = tpu.matmul %74, %75, %cst_59 {dimension_numbers = #tpu.dot_dimension_numbers<[1], [0], [0], [1], [0, 0, 1, 1], [], []>} : vector<32x128xbf16>, vector<128x128xbf16>, vector<32x128xf32> -> vector<32x128xf32>
    %c0_60 = arith.constant 0 : index
    %c0_61 = arith.constant 0 : index
    %77 = vector.load %arg10[%c0_60, %c0_61] : memref<1x128xf32, #tpu.memory_space<vmem>>, vector<1x128xf32>
    %78 = vector.broadcast %77 : vector<1x128xf32> to vector<32x128xf32>
    %79 = arith.addf %76, %78 : vector<32x128xf32>
    %80 = arith.addf %79, %2 : vector<32x128xf32>
    %cst_62 = arith.constant 0.000000e+00 : f32
    %81 = vector.broadcast %cst_62 : f32 to vector<32x128xf32>
    %82 = arith.maximumf %80, %81 : vector<32x128xf32>
    %83 = vector.shape_cast %82 : vector<32x128xf32> to vector<4x8x128xf32>
    %c0_63 = arith.constant 0 : index
    %c0_64 = arith.constant 0 : index
    %c0_65 = arith.constant 0 : index
    %c0_66 = arith.constant 0 : index
    %84 = vector.load %arg11[%c0_63, %c0_64, %c0_65, %c0_66] : memref<1x4x8x128xf32, #tpu.memory_space<vmem>>, vector<1x4x8x128xf32>
    %85 = vector.shape_cast %84 : vector<1x4x8x128xf32> to vector<4x8x128xf32>
    %86 = vector.shape_cast %83 : vector<4x8x128xf32> to vector<1x4x8x128xf32>
    tpu.vector_store %arg11[%c0_63, %c0_64, %c0_65, %c0_66], %86 {strides = array<i32>} : memref<1x4x8x128xf32, #tpu.memory_space<vmem>>, vector<1x4x8x128xf32>,
    return
  }
  func.func @transform_0(%arg0: i32, %arg1: i32) -> (i32, i32, i32, i32) {
    %c0_i32 = arith.constant 0 : i32
    %c0_i32_0 = arith.constant 0 : i32
    %c0_i32_1 = arith.constant 0 : i32
    return %arg0, %arg1, %c0_i32, %c0_i32_0 : i32, i32, i32, i32
  }
  func.func @transform_1(%arg0: i32, %arg1: i32) -> (i32, i32, i32, i32) {
    %c4_i32 = arith.constant 4 : i32
    %0 = arith.muli %arg1, %c4_i32 : i32
    %c1_i32 = arith.constant 1 : i32
    %1 = arith.subi %0, %c1_i32 : i32
    %c0_i32 = arith.constant 0 : i32
    %2 = arith.maxsi %1, %c0_i32 : i32
    %c0_i32_0 = arith.constant 0 : i32
    %c0_i32_1 = arith.constant 0 : i32
    %c0_i32_2 = arith.constant 0 : i32
    return %arg0, %2, %c0_i32_0, %c0_i32_1 : i32, i32, i32, i32
  }
  func.func @transform_2(%arg0: i32, %arg1: i32) -> (i32, i32, i32, i32) {
    %c1_i32 = arith.constant 1 : i32
    %0 = arith.addi %arg1, %c1_i32 : i32
    %c4_i32 = arith.constant 4 : i32
    %1 = arith.muli %0, %c4_i32 : i32
    %c7_i32 = arith.constant 7 : i32
    %2 = arith.minsi %1, %c7_i32 : i32
    %c0_i32 = arith.constant 0 : i32
    %c0_i32_0 = arith.constant 0 : i32
    %c0_i32_1 = arith.constant 0 : i32
    return %arg0, %2, %c0_i32, %c0_i32_0 : i32, i32, i32, i32
  }
  func.func @transform_3(%arg0: i32, %arg1: i32) -> (i32, i32) {
    %c0_i32 = arith.constant 0 : i32
    %c0_i32_0 = arith.constant 0 : i32
    %c0_i32_1 = arith.constant 0 : i32
    return %c0_i32, %c0_i32_0 : i32, i32
  }
  func.func @transform_4(%arg0: i32, %arg1: i32) -> (i32, i32) {
    %c0_i32 = arith.constant 0 : i32
    %c0_i32_0 = arith.constant 0 : i32
    %c0_i32_1 = arith.constant 0 : i32
    return %c0_i32, %c0_i32_0 : i32, i32
  }
  func.func @transform_5(%arg0: i32, %arg1: i32) -> (i32, i32) {
    %c0_i32 = arith.constant 0 : i32
    %c0_i32_0 = arith.constant 0 : i32
    %c0_i32_1 = arith.constant 0 : i32
    return %c0_i32, %c0_i32_0 : i32, i32
  }
  func.func @transform_6(%arg0: i32, %arg1: i32) -> (i32, i32) {
    %c0_i32 = arith.constant 0 : i32
    %c0_i32_0 = arith.constant 0 : i32
    %c0_i32_1 = arith.constant 0 : i32
    return %c0_i32, %c0_i32_0 : i32, i32
  }
  func.func @transform_7(%arg0: i32, %arg1: i32) -> (i32, i32) {
    %c0_i32 = arith.constant 0 : i32
    %c0_i32_0 = arith.constant 0 : i32
    %c0_i32_1 = arith.constant 0 : i32
    return %c0_i32, %c0_i32_0 : i32, i32
  }
  func.func @transform_8(%arg0: i32, %arg1: i32) -> (i32, i32) {
    %c0_i32 = arith.constant 0 : i32
    %c0_i32_0 = arith.constant 0 : i32
    %c0_i32_1 = arith.constant 0 : i32
    return %c0_i32, %c0_i32_0 : i32, i32
  }
  func.func @transform_9(%arg0: i32, %arg1: i32) -> (i32, i32, i32, i32) {
    %c0_i32 = arith.constant 0 : i32
    %c0_i32_0 = arith.constant 0 : i32
    %c0_i32_1 = arith.constant 0 : i32
    return %arg0, %arg1, %c0_i32, %c0_i32_0 : i32, i32, i32, i32
  }
}

</mosaic_0001>

<llo_original>
// kernel: tpu_custom_call.1
$region0: #{tpu_custom_call.1}
  #allocation0 [shape = 'u32[]', space=smem, size = 0x4, offset = 0x4, fixed_abs, tag = 'smem constant byte address 0x4 - core index']
  #allocation1 [shape = 'u32[144,128]{1,0:T(1,128)}', space=vmem, size = 0x12000, scoped, tag = 'internal scratch']
  #allocation2 [shape = 'f32[6,10,128]{2,1,0:T(8,128)}', space=vmem, size = 0xc000, scoped, tag = 'scratch operand']
  %s0 = inlined_call_operand.hbm [shape: f32[2,8,8,128], index: 0, kind: input, shape index: {}]
  %s1 = inlined_call_operand.hbm [shape: f32[2,8,8,128], index: 1, kind: input, shape index: {}]
  %s2 = inlined_call_operand.hbm [shape: f32[2,8,8,128], index: 2, kind: input, shape index: {}]
  %s3 = inlined_call_operand.hbm [shape: bf16[128,128], index: 3, kind: input, shape index: {}]
  %s4 = inlined_call_operand.vmem [shape: f32[1,128], index: 4, kind: input, shape index: {}]
  %s5 = inlined_call_operand.hbm [shape: bf16[1152,128], index: 5, kind: input, shape index: {}]
  %s6 = inlined_call_operand.vmem [shape: f32[1,128], index: 6, kind: input, shape index: {}]
  %s7 = inlined_call_operand.hbm [shape: bf16[128,128], index: 7, kind: input, shape index: {}]
  %s8 = inlined_call_operand.vmem [shape: f32[1,128], index: 8, kind: input, shape index: {}]
  %s9 = inlined_call_operand.hbm [shape: f32[2,8,8,128], index: 9, kind: output, shape index: {}]
  %s10 = sld [smem:[#allocation0]]
  $region93: #{tpu_custom_call.1} parent=0
    _
  %s12 = ssub.s32 1, %s10
  %s13 = scalar_select 0, %s12, %s10
  $region1: #{tpu_custom_call.1} parent=0
    #allocation3 [shape = 'u8[32768]{0}', space=vmem, size = 0x8000, scoped, tag = 'input window, operand 0']
    #allocation4 [shape = 's32[2]{0}', space=sflag, size = 0x8, scoped, tag = 'scoped memory for tpu_custom_call.1']
    #allocation5 [shape = 's32[2]{0}', space=sflag, size = 0x8, scoped, tag = 'scoped memory for tpu_custom_call.1']
    #allocation6 [shape = 'u8[8192]{0}', space=vmem, size = 0x2000, scoped, tag = 'input window, operand 1']
    #allocation7 [shape = 's32[2]{0}', space=sflag, size = 0x8, scoped, tag = 'scoped memory for tpu_custom_call.1']
    #allocation8 [shape = 'u8[8192]{0}', space=vmem, size = 0x2000, scoped, tag = 'input window, operand 2']
    #allocation9 [shape = 'u8[32768]{0}', space=vmem, size = 0x8000, scoped, tag = 'input window, operand 3, single buffered']
    #allocation10 [shape = 's32[1]{0}', space=sflag, size = 0x4, scoped, tag = 'scoped memory for tpu_custom_call.1']
    #allocation11 [shape = 'u8[294912]{0}', space=vmem, size = 0x48000, scoped, tag = 'input window, operand 5, single buffered']
    #allocation12 [shape = 'u8[32768]{0}', space=vmem, size = 0x8000, scoped, tag = 'input window, operand 7, single buffered']
    #allocation13 [shape = 's32[1]{0}', space=sflag, size = 0x4, scoped, tag = 'scoped memory for tpu_custom_call.1']
    #allocation14 [shape = 'u8[32768]{0}', space=vmem, size = 0x8000, scoped, tag = 'output window, operand 0']
    %14 = vsyncpa [#allocation4], 0
    %s15 = scalar_lea.sflag [#allocation4], 1
    %16 = vsyncpa %s15, 0
    %17 = vsyncpa [#allocation7], 0
    %s18 = scalar_lea.sflag [#allocation7], 1
    %19 = vsyncpa %s18, 0
    %20 = vsyncpa [#allocation10], 0
    %21 = vsyncpa [#allocation13], 0
    %22 = vsyncpa [#allocation5], 0
    %s23 = scalar_lea.sflag [#allocation5], 1
    %24 = vsyncpa %s23, 0
    loop: start=0, step=1, limit=6
    $region2: #{tpu_custom_call.1} parent=1 // loop_pre_header
      _
    $region3: #{tpu_custom_call.1} parent=1 // loop_header
      %s26 = sphi 0, %s30
      %p27 = scmp.ge.s32.totalorder %s26, 6
      %s33 = sphi 0, %s45
      %s34 = sphi 0, %s41
      %s35 = sphi 0, %s33
      %s36 = sphi 0, %s34
      %s37 = sphi 0, %s35
      %s38 = sphi 0, %s36
      %s50 = sphi 0, %s52
      %s53 = sphi 0, %s50
      %s54 = sphi 0, %s53
      %s70 = sphi 0, %s54
      %s86 = sphi 0, %s88
      %s89 = sphi 0, %s86
      %s90 = sphi 0, %s89
      %s106 = sphi 0, %s90
      %s122 = sphi 0, %s124
      %s125 = sphi 0, %s122
      %s126 = sphi 0, %s125
      %s142 = sphi 0, %s126
      %s146 = sphi 0, %s146
      %s148 = sphi 0, %s146
      %s149 = sphi 0, %s148
      %s163 = sphi 0, %s149
      %s167 = sphi 0, %s167
      %s169 = sphi 0, %s167
      %s170 = sphi 0, %s169
      %s184 = sphi 0, %s170
      %s188 = sphi 0, %s188
      %s190 = sphi 0, %s188
      %s191 = sphi 0, %s190
      %s205 = sphi 0, %s191
      %s209 = sphi 0, %s209
      %s211 = sphi 0, %s209
      %s212 = sphi 0, %s211
      %s226 = sphi 0, %s212
      %s230 = sphi 0, %s230
      %s232 = sphi 0, %s230
      %s233 = sphi 0, %s232
      %s247 = sphi 0, %s233
      %s251 = sphi 0, %s251
      %s253 = sphi 0, %s251
      %s254 = sphi 0, %s253
      %s268 = sphi 0, %s254
      %s276 = sphi 0, %s278
      %s279 = sphi 0, %s276
      %s280 = sphi 0, %s279
      %s296 = sphi 0, %s280
    $region4: #{tpu_custom_call.1} parent=1 // loop_header_branch
      %29 = sbr.rel (%p27) target = $region8
    $region5: #{tpu_custom_call.1} parent=1 // loop_body
      %s31 = ssub.s32 %s26, 1
      %s32 = ssub.s32 %s26, 2
      %s39 = sadd.s32 1, %s34
      %p40 = scmp.ge.s32.totalorder %s39, 2
      %s41 = scalar_select %p40, 0, %s39
      %s42 = sadd.s32 1, %s33
      %s43 = scalar_select %p40, %s42, %s33
      %p44 = scmp.ge.s32.totalorder %s43, 2
      %s45 = scalar_select %p44, 0, %s43
      %s46 = ssub.s32 %s33, %s45
      %s47 = ssub.s32 %s34, %s41
      %s48 = sor.u32 %s46, %s47
      %p49 = scmp.eq.s32.totalorder %s48, 0
      %s51 = sadd.s32 %s50, 1
      %s52 = scalar_select %p49, %s50, %s51
      %p55 = pneg %p49
      %p56 = scmp.eq.s32.totalorder %s26, 3
      %p57 = por %p55, %p56
      %p58 = scmp.ne.s32.totalorder %s50, %s53
      %p59 = scmp.eq.s32.totalorder %s26, 0
      %p60 = por %p58, %p59
      %p61 = scmp.ne.s32.totalorder %s50, %s53
      %p62 = scmp.eq.s32.totalorder %s31, 3
      %p63 = por %p61, %p62
      %p64 = scmp.ne.s32.totalorder %s53, %s54
      %p65 = scmp.eq.s32.totalorder %s31, 0
      %p66 = por %p64, %p65
      %p67 = scmp.ne.s32.totalorder %s53, %s54
      %p68 = scmp.eq.s32.totalorder %s32, 3
      %p69 = por %p67, %p68
      %p71 = scmp.ne.s32.totalorder %s54, %s70
      %p72 = scmp.eq.s32.totalorder %s32, 0
      %p73 = por %p71, %p72
      %s74 = smul.u32 %s34, 4
      %s75 = ssub.s32 %s74, 1
      %p76 = scmp.gt.s32.totalorder %s75, 0
      %s77 = scalar_select %p76, %s75, 0
      %s78 = smul.u32 %s41, 4
      %s79 = ssub.s32 %s78, 1
      %p80 = scmp.gt.s32.totalorder %s79, 0
      %s81 = scalar_select %p80, %s79, 0
      %s82 = ssub.s32 %s33, %s45
      %s83 = ssub.s32 %s77, %s81
      %s84 = sor.u32 %s82, %s83
      %p85 = scmp.eq.s32.totalorder %s84, 0
      %s87 = sadd.s32 %s86, 1
      %s88 = scalar_select %p85, %s86, %s87
      %p91 = pneg %p85
      %p92 = scmp.eq.s32.totalorder %s26, 3
      %p93 = por %p91, %p92
      %p94 = scmp.ne.s32.totalorder %s86, %s89
      %p95 = scmp.eq.s32.totalorder %s26, 0
      %p96 = por %p94, %p95
      %p97 = scmp.ne.s32.totalorder %s86, %s89
      %p98 = scmp.eq.s32.totalorder %s31, 3
      %p99 = por %p97, %p98
      %p100 = scmp.ne.s32.totalorder %s89, %s90
      %p101 = scmp.eq.s32.totalorder %s31, 0
      %p102 = por %p100, %p101
      %p103 = scmp.ne.s32.totalorder %s89, %s90
      %p104 = scmp.eq.s32.totalorder %s32, 3
      %p105 = por %p103, %p104
      %p107 = scmp.ne.s32.totalorder %s90, %s106
      %p108 = scmp.eq.s32.totalorder %s32, 0
      %p109 = por %p107, %p108
      %s110 = sadd.s32 %s34, 1
      %s111 = smul.u32 %s110, 4
      %p112 = scmp.lt.s32.totalorder %s111, 7
      %s113 = scalar_select %p112, %s111, 7
      %s114 = sadd.s32 %s41, 1
      %s115 = smul.u32 %s114, 4
      %p116 = scmp.lt.s32.totalorder %s115, 7
      %s117 = scalar_select %p116, %s115, 7
      %s118 = ssub.s32 %s33, %s45
      %s119 = ssub.s32 %s113, %s117
      %s120 = sor.u32 %s118, %s119
      %p121 = scmp.eq.s32.totalorder %s120, 0
      %s123 = sadd.s32 %s122, 1
      %s124 = scalar_select %p121, %s122, %s123
      %p127 = pneg %p121
      %p128 = scmp.eq.s32.totalorder %s26, 3
      %p129 = por %p127, %p128
      %p130 = scmp.ne.s32.totalorder %s122, %s125
      %p131 = scmp.eq.s32.totalorder %s26, 0
      %p132 = por %p130, %p131
      %p133 = scmp.ne.s32.totalorder %s122, %s125
      %p134 = scmp.eq.s32.totalorder %s31, 3
      %p135 = por %p133, %p134
      %p136 = scmp.ne.s32.totalorder %s125, %s126
      %p137 = scmp.eq.s32.totalorder %s31, 0
      %p138 = por %p136, %p137
      %p139 = scmp.ne.s32.totalorder %s125, %s126
      %p140 = scmp.eq.s32.totalorder %s32, 3
      %p141 = por %p139, %p140
      %p143 = scmp.ne.s32.totalorder %s126, %s142
      %p144 = scmp.eq.s32.totalorder %s32, 0
      %p145 = por %p143, %p144
      %s147 = sadd.s32 %s146, 1
      %p150 = scmp.eq.s32.totalorder %s26, 3
      %p151 = scmp.ne.s32.totalorder %s146, %s148
      %p152 = scmp.eq.s32.totalorder %s26, 0
      %p153 = por %p151, %p152
      %p154 = scmp.ne.s32.totalorder %s146, %s148
      %p155 = scmp.eq.s32.totalorder %s31, 3
      %p156 = por %p154, %p155
      %p157 = scmp.ne.s32.totalorder %s148, %s149
      %p158 = scmp.eq.s32.totalorder %s31, 0
      %p159 = por %p157, %p158
      %p160 = scmp.ne.s32.totalorder %s148, %s149
      %p161 = scmp.eq.s32.totalorder %s32, 3
      %p162 = por %p160, %p161
      %p164 = scmp.ne.s32.totalorder %s149, %s163
      %p165 = scmp.eq.s32.totalorder %s32, 0
      %p166 = por %p164, %p165
      %s168 = sadd.s32 %s167, 1
      %p171 = scmp.eq.s32.totalorder %s26, 3
      %p172 = scmp.ne.s32.totalorder %s167, %s169
      %p173 = scmp.eq.s32.totalorder %s26, 0
      %p174 = por %p172, %p173
      %p175 = scmp.ne.s32.totalorder %s167, %s169
      %p176 = scmp.eq.s32.totalorder %s31, 3
      %p177 = por %p175, %p176
      %p178 = scmp.ne.s32.totalorder %s169, %s170
      %p179 = scmp.eq.s32.totalorder %s31, 0
      %p180 = por %p178, %p179
      %p181 = scmp.ne.s32.totalorder %s169, %s170
      %p182 = scmp.eq.s32.totalorder %s32, 3
      %p183 = por %p181, %p182
      %p185 = scmp.ne.s32.totalorder %s170, %s184
      %p186 = scmp.eq.s32.totalorder %s32, 0
      %p187 = por %p185, %p186
      %s189 = sadd.s32 %s188, 1
      %p192 = scmp.eq.s32.totalorder %s26, 3
      %p193 = scmp.ne.s32.totalorder %s188, %s190
      %p194 = scmp.eq.s32.totalorder %s26, 0
      %p195 = por %p193, %p194
      %p196 = scmp.ne.s32.totalorder %s188, %s190
      %p197 = scmp.eq.s32.totalorder %s31, 3
      %p198 = por %p196, %p197
      %p199 = scmp.ne.s32.totalorder %s190, %s191
      %p200 = scmp.eq.s32.totalorder %s31, 0
      %p201 = por %p199, %p200
      %p202 = scmp.ne.s32.totalorder %s190, %s191
      %p203 = scmp.eq.s32.totalorder %s32, 3
      %p204 = por %p202, %p203
      %p206 = scmp.ne.s32.totalorder %s191, %s205
      %p207 = scmp.eq.s32.totalorder %s32, 0
      %p208 = por %p206, %p207
      %s210 = sadd.s32 %s209, 1
      %p213 = scmp.eq.s32.totalorder %s26, 3
      %p214 = scmp.ne.s32.totalorder %s209, %s211
      %p215 = scmp.eq.s32.totalorder %s26, 0
      %p216 = por %p214, %p215
      %p217 = scmp.ne.s32.totalorder %s209, %s211
      %p218 = scmp.eq.s32.totalorder %s31, 3
      %p219 = por %p217, %p218
      %p220 = scmp.ne.s32.totalorder %s211, %s212
      %p221 = scmp.eq.s32.totalorder %s31, 0
      %p222 = por %p220, %p221
      %p223 = scmp.ne.s32.totalorder %s211, %s212
      %p224 = scmp.eq.s32.totalorder %s32, 3
      %p225 = por %p223, %p224
      %p227 = scmp.ne.s32.totalorder %s212, %s226
      %p228 = scmp.eq.s32.totalorder %s32, 0
      %p229 = por %p227, %p228
      %s231 = sadd.s32 %s230, 1
      %p234 = scmp.eq.s32.totalorder %s26, 3
      %p235 = scmp.ne.s32.totalorder %s230, %s232
      %p236 = scmp.eq.s32.totalorder %s26, 0
      %p237 = por %p235, %p236
      %p238 = scmp.ne.s32.totalorder %s230, %s232
      %p239 = scmp.eq.s32.totalorder %s31, 3
      %p240 = por %p238, %p239
      %p241 = scmp.ne.s32.totalorder %s232, %s233
      %p242 = scmp.eq.s32.totalorder %s31, 0
      %p243 = por %p241, %p242
      %p244 = scmp.ne.s32.totalorder %s232, %s233
      %p245 = scmp.eq.s32.totalorder %s32, 3
      %p246 = por %p244, %p245
      %p248 = scmp.ne.s32.totalorder %s233, %s247
      %p249 = scmp.eq.s32.totalorder %s32, 0
      %p250 = por %p248, %p249
      %s252 = sadd.s32 %s251, 1
      %p255 = scmp.eq.s32.totalorder %s26, 3
      %p256 = scmp.ne.s32.totalorder %s251, %s253
      %p257 = scmp.eq.s32.totalorder %s26, 0
      %p258 = por %p256, %p257
      %p259 = scmp.ne.s32.totalorder %s251, %s253
      %p260 = scmp.eq.s32.totalorder %s31, 3
      %p261 = por %p259, %p260
      %p262 = scmp.ne.s32.totalorder %s253, %s254
      %p263 = scmp.eq.s32.totalorder %s31, 0
      %p264 = por %p262, %p263
      %p265 = scmp.ne.s32.totalorder %s253, %s254
      %p266 = scmp.eq.s32.totalorder %s32, 3
      %p267 = por %p265, %p266
      %p269 = scmp.ne.s32.totalorder %s254, %s268
      %p270 = scmp.eq.s32.totalorder %s32, 0
      %p271 = por %p269, %p270
      %s272 = ssub.s32 %s33, %s45
      %s273 = ssub.s32 %s34, %s41
      %s274 = sor.u32 %s272, %s273
      %p275 = scmp.eq.s32.totalorder %s274, 0
      %s277 = sadd.s32 %s276, 1
      %s278 = scalar_select %p275, %s276, %s277
      %p281 = pneg %p275
      %p282 = scmp.eq.s32.totalorder %s26, 3
      %p283 = por %p281, %p282
      %p284 = scmp.ne.s32.totalorder %s276, %s279
      %p285 = scmp.eq.s32.totalorder %s26, 0
      %p286 = por %p284, %p285
      %p287 = scmp.ne.s32.totalorder %s276, %s279
      %p288 = scmp.eq.s32.totalorder %s31, 3
      %p289 = por %p287, %p288
      %p290 = scmp.ne.s32.totalorder %s279, %s280
      %p291 = scmp.eq.s32.totalorder %s31, 0
      %p292 = por %p290, %p291
      %p293 = scmp.ne.s32.totalorder %s279, %s280
      %p294 = scmp.eq.s32.totalorder %s32, 3
      %p295 = por %p293, %p294
      %p297 = scmp.ne.s32.totalorder %s280, %s296
      %p298 = scmp.eq.s32.totalorder %s32, 0
      %p299 = por %p297, %p298
      %p300 = scmp.le.s32.totalorder 1, %s26
      %p301 = scmp.lt.s32.totalorder %s26, 5
      %p302 = pnand %p300, %p301
      %p303 = pneg %p302
      // Predicated region
      $region9: #{tpu_custom_call.1} parent=5 // pred_check
        _
      $region10: #{tpu_custom_call.1} parent=5 // pred_check_branch
        %305 = sbr.rel (%p302) target = $region12
      $region11: #{tpu_custom_call.1} parent=5 // pred_region
        %s306 = ssub.s32 %s26, 1
        // Predicated region
        $region13: #{tpu_custom_call.1} parent=11 // pred_check
          %p307 = pneg %p159
        $region14: #{tpu_custom_call.1} parent=11 // pred_check_branch
          %309 = sbr.rel (%p307) target = $region16
        $region15: #{tpu_custom_call.1} parent=11 // pred_region
          %s311 = ssub.s32 1024, 1024
          %312 = vsyncadd [#allocation10], %s311
          %s313 = sshll.u32 [#allocation9], 4
          %s314 = int_to_ptr.vmem [resolvable:$true] %s313
          %319 = dma.hbm_to_vmem [thread:$0]  %s3, 1024, %s314, [#allocation10], 64, 64, 4
        $region16: #{tpu_custom_call.1} parent=11 // pred_fallthru
          _
        // Predicated region
        $region17: #{tpu_custom_call.1} parent=11 // pred_check
          %p320 = pneg %p180
        $region18: #{tpu_custom_call.1} parent=11 // pred_check_branch
          %322 = sbr.rel (%p320) target = $region20
        $region19: #{tpu_custom_call.1} parent=11 // pred_region
          _
        $region20: #{tpu_custom_call.1} parent=11 // pred_fallthru
          _
        // Predicated region
        $region21: #{tpu_custom_call.1} parent=11 // pred_check
          %p323 = pneg %p201
        $region22: #{tpu_custom_call.1} parent=11 // pred_check_branch
          %325 = sbr.rel (%p323) target = $region24
        $region23: #{tpu_custom_call.1} parent=11 // pred_region
          %s327 = ssub.s32 9216, 9216
          %328 = vsyncadd [#allocation10], %s327
          %s329 = sshll.u32 [#allocation11], 4
          %s330 = int_to_ptr.vmem [resolvable:$true] %s329
          %335 = dma.hbm_to_vmem [thread:$0]  %s5, 9216, %s330, [#allocation10], 64, 64, 4
        $region24: #{tpu_custom_call.1} parent=11 // pred_fallthru
          _
        // Predicated region
        $region25: #{tpu_custom_call.1} parent=11 // pred_check
          %p336 = pneg %p222
        $region26: #{tpu_custom_call.1} parent=11 // pred_check_branch
          %338 = sbr.rel (%p336) target = $region28
        $region27: #{tpu_custom_call.1} parent=11 // pred_region
          _
        $region28: #{tpu_custom_call.1} parent=11 // pred_fallthru
          _
        // Predicated region
        $region29: #{tpu_custom_call.1} parent=11 // pred_check
          %p339 = pneg %p243
        $region30: #{tpu_custom_call.1} parent=11 // pred_check_branch
          %341 = sbr.rel (%p339) target = $region32
        $region31: #{tpu_custom_call.1} parent=11 // pred_region
          %s343 = ssub.s32 1024, 1024
          %344 = vsyncadd [#allocation13], %s343
          %s345 = sshll.u32 [#allocation12], 4
          %s346 = int_to_ptr.vmem [resolvable:$true] %s345
          %351 = dma.hbm_to_vmem [thread:$0]  %s7, 1024, %s346, [#allocation13], 64, 64, 4
        $region32: #{tpu_custom_call.1} parent=11 // pred_fallthru
          _
        // Predicated region
        $region33: #{tpu_custom_call.1} parent=11 // pred_check
          %p352 = pneg %p264
        $region34: #{tpu_custom_call.1} parent=11 // pred_check_branch
          %354 = sbr.rel (%p352) target = $region36
        $region35: #{tpu_custom_call.1} parent=11 // pred_region
          _
        $region36: #{tpu_custom_call.1} parent=11 // pred_fallthru
          _
      $region12: #{tpu_custom_call.1} parent=5 // pred_fallthru
        _
      %p355 = scmp.lt.s32.totalorder %s26, 4
      // Predicated region
      $region37: #{tpu_custom_call.1} parent=5 // pred_check
        %p356 = pneg %p355
      $region38: #{tpu_custom_call.1} parent=5 // pred_check_branch
        %358 = sbr.rel (%p356) target = $region40
      $region39: #{tpu_custom_call.1} parent=5 // pred_region
        // Predicated region
        $region41: #{tpu_custom_call.1} parent=39 // pred_check
          %p359 = pneg %p60
        $region42: #{tpu_custom_call.1} parent=39 // pred_check_branch
          %361 = sbr.rel (%p359) target = $region44
        $region43: #{tpu_custom_call.1} parent=39 // pred_region
          %s362 = sand.u32 %s50, 1
          %s363 = scalar_lea.sflag [#allocation4], %s362
          %s364 = sand.u32 %s50, 1
          %s365 = smul.addr %s364, 32
          %s366 = scalar_lea.vmem [#allocation3], %s365
          %s367 = smul.u32 4, %s34
          %s369 = ssub.s32 512, 512
          %370 = vsyncadd %s363, %s369
          %s371 = smul.addr %s33, 8
          %s372 = sadd.s32 %s367, %s371
          %s373 = smul.addr %s372, 128
          %s374 = scalar_lea.hbm %s0, %s373
          %s375 = sshll.u32 %s366, 4
          %s376 = int_to_ptr.vmem [resolvable:$true] %s375
          %381 = dma.hbm_to_vmem [thread:$0]  %s374, 512, %s376, %s363, 128, 128, 8
        $region44: #{tpu_custom_call.1} parent=39 // pred_fallthru
          _
        // Predicated region
        $region45: #{tpu_custom_call.1} parent=39 // pred_check
          %p382 = pneg %p96
        $region46: #{tpu_custom_call.1} parent=39 // pred_check_branch
          %384 = sbr.rel (%p382) target = $region48
        $region47: #{tpu_custom_call.1} parent=39 // pred_region
          %s385 = sand.u32 %s26, 1
          %s386 = scalar_lea.sflag [#allocation7], %s385
          %s387 = sand.u32 %s86, 1
          %s388 = smul.addr %s387, 8
          %s389 = scalar_lea.vmem [#allocation6], %s388
          %s390 = smul.u32 %s34, 4
          %s391 = ssub.s32 %s390, 1
          %p392 = scmp.gt.s32.totalorder %s391, 0
          %s393 = scalar_select %p392, %s391, 0
          %s395 = ssub.s32 128, 128
          %396 = vsyncadd %s386, %s395
          %s397 = smul.addr %s33, 8
          %s398 = sadd.s32 %s393, %s397
          %s399 = smul.addr %s398, 128
          %s400 = scalar_lea.hbm %s1, %s399
          %s402 = sshll.u32 %s389, 4
          %s403 = int_to_ptr.vmem [resolvable:$true] %s402
          %405 = dma.hbm_to_vmem [thread:$0]  %s400, 128, %s403, %s386
        $region48: #{tpu_custom_call.1} parent=39 // pred_fallthru
          _
        // Predicated region
        $region49: #{tpu_custom_call.1} parent=39 // pred_check
          %p406 = pneg %p132
        $region50: #{tpu_custom_call.1} parent=39 // pred_check_branch
          %408 = sbr.rel (%p406) target = $region52
        $region51: #{tpu_custom_call.1} parent=39 // pred_region
          %s409 = sand.u32 %s26, 1
          %s410 = scalar_lea.sflag [#allocation7], %s409
          %s411 = sand.u32 %s122, 1
          %s412 = smul.addr %s411, 8
          %s413 = scalar_lea.vmem [#allocation8], %s412
          %s414 = sadd.s32 %s34, 1
          %s415 = smul.u32 %s414, 4
          %p416 = scmp.lt.s32.totalorder %s415, 7
          %s417 = scalar_select %p416, %s415, 7
          %s419 = ssub.s32 128, 128
          %420 = vsyncadd %s410, %s419
          %s421 = smul.addr %s33, 8
          %s422 = sadd.s32 %s417, %s421
          %s423 = smul.addr %s422, 128
          %s424 = scalar_lea.hbm %s2, %s423
          %s426 = sshll.u32 %s413, 4
          %s427 = int_to_ptr.vmem [resolvable:$true] %s426
          %429 = dma.hbm_to_vmem [thread:$0]  %s424, 128, %s427, %s410
        $region52: #{tpu_custom_call.1} parent=39 // pred_fallthru
          _
      $region40: #{tpu_custom_call.1} parent=5 // pred_fallthru
        _
      %p430 = scmp.le.s32.totalorder 1, %s26
      %p431 = scmp.lt.s32.totalorder %s26, 5
      %p432 = pnand %p430, %p431
      %p433 = pneg %p432
      // Predicated region
      $region53: #{tpu_custom_call.1} parent=5 // pred_check
        _
      $region54: #{tpu_custom_call.1} parent=5 // pred_check_branch
        %435 = sbr.rel (%p432) target = $region56
      $region55: #{tpu_custom_call.1} parent=5 // pred_region
        %s436 = ssub.s32 %s26, 1
        %s437 = sand.u32 %s53, 1
        %s438 = scalar_lea.sflag [#allocation4], %s437
        %s439 = sand.u32 %s53, 1
        %s440 = smul.addr %s439, 32
        %s441 = scalar_lea.vmem [#allocation3], %s440
        // Predicated region
        $region57: #{tpu_custom_call.1} parent=55 // pred_check
          %p442 = pneg %p66
        $region58: #{tpu_custom_call.1} parent=55 // pred_check_branch
          %444 = sbr.rel (%p442) target = $region60
        $region59: #{tpu_custom_call.1} parent=55 // pred_region
          %445 = dma.done %s438, 512
        $region60: #{tpu_custom_call.1} parent=55 // pred_fallthru
          _
        %s446 = sand.u32 %s31, 1
        %s447 = scalar_lea.sflag [#allocation7], %s446
        %s448 = sand.u32 %s89, 1
        %s449 = smul.addr %s448, 8
        %s450 = scalar_lea.vmem [#allocation6], %s449
        // Predicated region
        $region61: #{tpu_custom_call.1} parent=55 // pred_check
          %p451 = pneg %p102
        $region62: #{tpu_custom_call.1} parent=55 // pred_check_branch
          %453 = sbr.rel (%p451) target = $region64
        $region63: #{tpu_custom_call.1} parent=55 // pred_region
          %454 = dma.done %s447, 128
        $region64: #{tpu_custom_call.1} parent=55 // pred_fallthru
          _
        %s455 = sand.u32 %s31, 1
        %s456 = scalar_lea.sflag [#allocation7], %s455
        %s457 = sand.u32 %s125, 1
        %s458 = smul.addr %s457, 8
        %s459 = scalar_lea.vmem [#allocation8], %s458
        // Predicated region
        $region65: #{tpu_custom_call.1} parent=55 // pred_check
          %p460 = pneg %p138
        $region66: #{tpu_custom_call.1} parent=55 // pred_check_branch
          %462 = sbr.rel (%p460) target = $region68
        $region67: #{tpu_custom_call.1} parent=55 // pred_region
          %463 = dma.done %s456, 128
        $region68: #{tpu_custom_call.1} parent=55 // pred_fallthru
          _
        // Predicated region
        $region69: #{tpu_custom_call.1} parent=55 // pred_check
          %p464 = pneg %p159
        $region70: #{tpu_custom_call.1} parent=55 // pred_check_branch
          %466 = sbr.rel (%p464) target = $region72
        $region71: #{tpu_custom_call.1} parent=55 // pred_region
          %467 = dma.done [#allocation10], 1024
        $region72: #{tpu_custom_call.1} parent=55 // pred_fallthru
          _
        // Predicated region
        $region73: #{tpu_custom_call.1} parent=55 // pred_check
          %p468 = pneg %p201
        $region74: #{tpu_custom_call.1} parent=55 // pred_check_branch
          %470 = sbr.rel (%p468) target = $region76
        $region75: #{tpu_custom_call.1} parent=55 // pred_region
          %471 = dma.done [#allocation10], 9216
        $region76: #{tpu_custom_call.1} parent=55 // pred_fallthru
          _
        // Predicated region
        $region77: #{tpu_custom_call.1} parent=55 // pred_check
          %p472 = pneg %p243
        $region78: #{tpu_custom_call.1} parent=55 // pred_check_branch
          %474 = sbr.rel (%p472) target = $region80
        $region79: #{tpu_custom_call.1} parent=55 // pred_region
          %475 = dma.done [#allocation13], 1024
        $region80: #{tpu_custom_call.1} parent=55 // pred_fallthru
          _
        %s476 = sand.u32 %s53, 1
        %s477 = scalar_lea.sflag [#allocation4], %s476
        %s478 = sand.u32 %s53, 1
        %s479 = smul.addr %s478, 32
        %s480 = scalar_lea.vmem [#allocation3], %s479
        %p481 = pneg %p66
        %p482 = pneg %p63
        %s483 = sand.u32 %s31, 1
        %s484 = scalar_lea.sflag [#allocation7], %s483
        %s485 = sand.u32 %s89, 1
        %s486 = smul.addr %s485, 8
        %s487 = scalar_lea.vmem [#allocation6], %s486
        %p488 = pneg %p102
        %p489 = pneg %p99
        %s490 = sand.u32 %s31, 1
        %s491 = scalar_lea.sflag [#allocation7], %s490
        %s492 = sand.u32 %s125, 1
        %s493 = smul.addr %s492, 8
        %s494 = scalar_lea.vmem [#allocation8], %s493
        %p495 = pneg %p138
        %p496 = pneg %p135
        %p497 = pneg %p159
        %p498 = pneg %p156
        %p499 = pneg %p180
        %p500 = pneg %p177
        %p501 = pneg %p201
        %p502 = pneg %p198
        %p503 = pneg %p222
        %p504 = pneg %p219
        %p505 = pneg %p243
        %p506 = pneg %p240
        %p507 = pneg %p264
        %p508 = pneg %p261
        %p509 = pneg %p292
        %p510 = pneg %p289
        %s511 = sand.u32 %s279, 1
        %s512 = scalar_lea.sflag [#allocation5], %s511
        %s513 = sand.u32 %s279, 1
        %s514 = smul.addr %s513, 32
        %s515 = scalar_lea.vmem [#allocation14], %s514
        %s516 = smul.u32 4, %s36
        %s517 = smul.u32 %s36, 4
        %s518 = ssub.s32 %s517, 1
        %p519 = scmp.gt.s32.totalorder %s518, 0
        %s520 = scalar_select %p519, %s518, 0
        %s521 = sadd.s32 %s36, 1
        %s522 = smul.u32 %s521, 4
        %p523 = scmp.lt.s32.totalorder %s522, 7
        %s524 = scalar_select %p523, %s522, 7
        %s525 = smul.u32 4, %s36
        %v527 = vld [vmem:[%s441] sm:$0xff]
        %v528 = vld [vmem:[%s441 + $0x8] sm:$0xff]
        %v529 = vld [vmem:[%s441 + $0x10] sm:$0xff]
        %v530 = vld [vmem:[%s441 + $0x18] sm:$0xff]
        %v531 = vld [vmem:[%s450] sm:$0xff]
        %v532 = vpack.c.bf16 %v531, %v531
        %v533 = vpack.c.bf16 %v528, %v527
        %v534 = vpack.c.bf16 %v530, %v529
        %v535 = vld [vmem:[%s459] sm:$0xff]
        %v536 = vpack.c.bf16 %v535, %v535
        %vm539 = vcmask 1043456
        %v540 = vrot.slane %v533, 4
        %v541 = vrot.slane %v534, 4
        %v542 = vsel %vm539, %v540, %v541
        %v545 = vrot.slane %v536, 4
        %vm546 = vcmask 1043456
        %v549 = vsel %vm546, %v532, %v540
        %v553 = vsel %vm546, %v541, %v545
        %v555 = vld [vmem:[#allocation9] sm:$0xf]
        %v556 = vld [vmem:[#allocation9 + $0x4] sm:$0xf]
        %v557 = vld [vmem:[#allocation9 + $0x8] sm:$0xf]
        %v558 = vld [vmem:[#allocation9 + $0xc] sm:$0xf]
        %v559 = vld [vmem:[#allocation9 + $0x10] sm:$0xf]
        %v560 = vld [vmem:[#allocation9 + $0x14] sm:$0xf]
        %v561 = vld [vmem:[#allocation9 + $0x18] sm:$0xf]
        %v562 = vld [vmem:[#allocation9 + $0x1c] sm:$0xf]
        %v563 = vld [vmem:[#allocation9 + $0x20] sm:$0xf]
        %v564 = vld [vmem:[#allocation9 + $0x24] sm:$0xf]
        %v565 = vld [vmem:[#allocation9 + $0x28] sm:$0xf]
        %v566 = vld [vmem:[#allocation9 + $0x2c] sm:$0xf]
        %v567 = vld [vmem:[#allocation9 + $0x30] sm:$0xf]
        %v568 = vld [vmem:[#allocation9 + $0x34] sm:$0xf]
        %v569 = vld [vmem:[#allocation9 + $0x38] sm:$0xf]
        %v570 = vld [vmem:[#allocation9 + $0x3c] sm:$0xf]
        %v571 = vld [vmem:[%s4] sm:$0x1]
        %v573 = vlaneseq
        %v574 = vshrl.u32 %v573, 7
        %v575 = vsub.s32 0, %v574
        %v576 = vrot.slane %v571, %v575
        %v594 = vunpack.c.l.b16 %v555
        %v595 = vunpack.c.l.b16 %v556
        %v596 = vunpack.c.l.b16 %v557
        %v597 = vunpack.c.l.b16 %v558
        %v598 = vunpack.c.l.b16 %v559
        %v599 = vunpack.c.l.b16 %v560
        %v600 = vunpack.c.l.b16 %v561
        %v601 = vunpack.c.l.b16 %v562
        %v602 = vunpack.c.l.b16 %v563
        %v603 = vunpack.c.l.b16 %v564
        %v604 = vunpack.c.l.b16 %v565
        %v605 = vunpack.c.l.b16 %v566
        %v606 = vunpack.c.l.b16 %v567
        %v607 = vunpack.c.l.b16 %v568
        %v608 = vunpack.c.l.b16 %v569
        %v609 = vunpack.c.l.b16 %v570
        %v610 = vpack.c.b16 %v595, %v594
        %v611 = vpack.c.b16 %v597, %v596
        %v612 = vpack.c.b16 %v599, %v598
        %v613 = vpack.c.b16 %v601, %v600
        %v614 = vpack.c.b16 %v603, %v602
        %v615 = vpack.c.b16 %v605, %v604
        %v616 = vpack.c.b16 %v607, %v606
        %v617 = vpack.c.b16 %v609, %v608
        %626 = vmatprep.subr.bf16.mxu0 0
        %627 = vmatpush1.bf16.msra.mxu0 %v610
        %628 = vmatprep.subr.bf16.mxu0 0
        %629 = vmatpush1.bf16.msra.mxu0 %v611
        %630 = vmatprep.subr.bf16.mxu0 0
        %631 = vmatpush1.bf16.msra.mxu0 %v612
        %632 = vmatprep.subr.bf16.mxu0 0
        %633 = vmatpush1.bf16.msra.mxu0 %v613
        %634 = vmatprep.subr.bf16.mxu0 0
        %635 = vmatpush1.bf16.msra.mxu0 %v614
        %636 = vmatprep.subr.bf16.mxu0 0
        %637 = vmatpush1.bf16.msra.mxu0 %v615
        %638 = vmatprep.subr.bf16.mxu0 0
        %639 = vmatpush1.bf16.msra.mxu0 %v616
        %640 = vmatprep.subr.bf16.mxu0 0
        %641 = vmatpush1.bf16.msra.mxu0 %v617
        %642 = vmatprep.subr.bf16.mxu0 0
        %643 = vmatpush1.bf16.msra.mxu0 0
        %644 = vmatprep.subr.bf16.mxu0 0
        %645 = vmatpush1.bf16.msra.mxu0 0
        %646 = vmatprep.subr.bf16.mxu0 0
        %647 = vmatpush1.bf16.msra.mxu0 0
        %648 = vmatprep.subr.bf16.mxu0 0
        %649 = vmatpush1.bf16.msra.mxu0 0
        %650 = vmatprep.subr.bf16.mxu0 0
        %651 = vmatpush1.bf16.msra.mxu0 0
        %652 = vmatprep.subr.bf16.mxu0 0
        %653 = vmatpush1.bf16.msra.mxu0 0
        %654 = vmatprep.subr.bf16.mxu0 0
        %655 = vmatpush1.bf16.msra.mxu0 0
        %656 = vmatprep.subr.bf16.mxu0 0
        %657 = vmatpush1.bf16.msra.mxu0 0
        %658 = vmatprep.mubr.bf16.mxu0 0
        %659 = vmatmul.mubr.bf16.gmra.mrb[0].mxu0 %v549
        %v660 = vpop.f32.mrb[0].mxu0
        %v661 = vadd.f32 %v576, %v660
        %v662 = vpop.f32.mrb[0].mxu0
        %v663 = vpop.f32.mrb[0].mxu0
        %v664 = vadd.f32 %v576, %v663
        %v665 = vpop.f32.mrb[0].mxu0
        %666 = vmatprep.mubr.bf16.mxu0 0
        %667 = vmatmul.mubr.bf16.gmra.mrb[0].mxu0 %v542
        %v668 = vpop.f32.mrb[0].mxu0
        %v669 = vadd.f32 %v576, %v668
        %v670 = vpop.f32.mrb[0].mxu0
        %v671 = vpop.f32.mrb[0].mxu0
        %v672 = vadd.f32 %v576, %v671
        %v673 = vpop.f32.mrb[0].mxu0
        %674 = vmatprep.mubr.bf16.mxu0 0
        %675 = vmatmul.mubr.bf16.gmra.mrb[0].mxu0 %v553
        %v676 = vpop.f32.mrb[0].mxu0
        %v677 = vadd.f32 %v576, %v676
        %v678 = vpop.f32.mrb[0].mxu0
        %v679 = vpop.f32.mrb[0].mxu0
        %v680 = vadd.f32 %v576, %v679
        %v681 = vpop.f32.mrb[0].mxu0
        %682 = vdwg.mxu0
        %v683 = vmax.f32 %v661, 0.0
        %v684 = vmax.f32 %v664, 0.0
        %v685 = vmax.f32 %v669, 0.0
        %v686 = vmax.f32 %v672, 0.0
        %v687 = vmax.f32 %v677, 0.0
        %v688 = vmax.f32 %v680, 0.0
        %v689 = vlaneseq
        %v690 = vshrl.u32 %v689, 7
        %v691 = vadd.s32 %v690, 8
        %v692 = vadd.s32 %v690, 16
        %v693 = vadd.s32 %v690, 24
        %v694 = vadd.s32 %v690, 32
        %v695 = vadd.s32 %v690, 40
        %p696 = scmp.eq.s32.totalorder %s36, 0
        %vm697 = vcmp.lt.s32.totalorder %v690, 8
        %vm698 = vcmp.lt.s32.totalorder %v691, 8
        %vm699 = vcmp.lt.s32.totalorder %v692, 8
        %vm700 = vcmp.lt.s32.totalorder %v693, 8
        %vm701 = vcmp.lt.s32.totalorder %v694, 8
        %vm702 = vcmp.lt.s32.totalorder %v695, 8
        %s703 = scalar_select %p696, 1, 0
        %v704 = vstv %s703
        %vm705 = vcmp.eq.s32.totalorder %v704, 1
        %vm706 = vmand %vm705, %vm697
        %vm707 = vmand %vm705, %vm698
        %vm708 = vmand %vm705, %vm699
        %vm709 = vmand %vm705, %vm700
        %vm710 = vmand %vm705, %vm701
        %vm711 = vmand %vm705, %vm702
        %p712 = scmp.eq.s32.totalorder %s36, 1
        %vm713 = vcmp.ge.s32.totalorder %v690, 40
        %vm714 = vcmp.ge.s32.totalorder %v691, 40
        %vm715 = vcmp.ge.s32.totalorder %v692, 40
        %vm716 = vcmp.ge.s32.totalorder %v693, 40
        %vm717 = vcmp.ge.s32.totalorder %v694, 40
        %vm718 = vcmp.ge.s32.totalorder %v695, 40
        %s719 = scalar_select %p712, 1, 0
        %v720 = vstv %s719
        %vm721 = vcmp.eq.s32.totalorder %v720, 1
        %vm722 = vmand %vm721, %vm713
        %vm723 = vmand %vm721, %vm714
        %vm724 = vmand %vm721, %vm715
        %vm725 = vmand %vm721, %vm716
        %vm726 = vmand %vm721, %vm717
        %vm727 = vmand %vm721, %vm718
        %vm728 = vmor %vm706, %vm722
        %vm729 = vmor %vm707, %vm723
        %vm730 = vmor %vm708, %vm724
        %vm731 = vmor %vm709, %vm725
        %vm732 = vmor %vm710, %vm726
        %vm733 = vmor %vm711, %vm727
        %v734 = vsel %vm728, 1, 0
        %v735 = vsel %vm729, 1, 0
        %v736 = vsel %vm730, 1, 0
        %v737 = vsel %vm731, 1, 0
        %v738 = vsel %vm732, 1, 0
        %v739 = vsel %vm733, 1, 0
        %vm740 = vcmp.eq.s32.totalorder %v734, 1
        %vm741 = vcmp.eq.s32.totalorder %v735, 1
        %vm742 = vcmp.eq.s32.totalorder %v736, 1
        %vm743 = vcmp.eq.s32.totalorder %v737, 1
        %vm744 = vcmp.eq.s32.totalorder %v738, 1
        %vm745 = vcmp.eq.s32.totalorder %v739, 1
        %v746 = vsel %vm740, 0.0, %v683
        %v747 = vsel %vm741, 0.0, %v684
        %v748 = vsel %vm742, 0.0, %v685
        %v749 = vsel %vm743, 0.0, %v686
        %v750 = vsel %vm744, 0.0, %v687
        %v751 = vsel %vm745, 0.0, %v688
        %752 = vst [vmem:[#allocation2] sm:$0x1] 0.0
        %753 = vst [vmem:[#allocation2 + $0x10] sm:$0x1] 0.0
        %754 = vst [vmem:[#allocation2 + $0x20] sm:$0x1] 0.0
        %755 = vst [vmem:[#allocation2 + $0x30] sm:$0x1] 0.0
        %756 = vst [vmem:[#allocation2 + $0x40] sm:$0x1] 0.0
        %757 = vst [vmem:[#allocation2 + $0x50] sm:$0x1] 0.0
        %758 = vst [vmem:[#allocation2 + $0x9] sm:$0x1] 0.0
        %759 = vst [vmem:[#allocation2 + $0x19] sm:$0x1] 0.0
        %760 = vst [vmem:[#allocation2 + $0x29] sm:$0x1] 0.0
        %761 = vst [vmem:[#allocation2 + $0x39] sm:$0x1] 0.0
        %762 = vst [vmem:[#allocation2 + $0x49] sm:$0x1] 0.0
        %763 = vst [vmem:[#allocation2 + $0x59] sm:$0x1] 0.0
        %764 = vst [vmem:[#allocation2 + $0x1] sm:$0xff] %v746
        %765 = vst [vmem:[#allocation2 + $0x11] sm:$0xff] %v747
        %766 = vst [vmem:[#allocation2 + $0x21] sm:$0xff] %v748
        %767 = vst [vmem:[#allocation2 + $0x31] sm:$0xff] %v749
        %768 = vst [vmem:[#allocation2 + $0x41] sm:$0xff] %v750
        %769 = vst [vmem:[#allocation2 + $0x51] sm:$0xff] %v751
        %v770 = vld [vmem:[#allocation2] sm:$0xff]
        %v771 = vld [vmem:[#allocation2 + $0x10] sm:$0xff]
        %v772 = vld [vmem:[#allocation2 + $0x20] sm:$0xff]
        %v773 = vld [vmem:[#allocation2 + $0x30] sm:$0xff]
        %v774 = vpack.c.bf16 %v770, %v770
        %v775 = vpack.c.bf16 %v771, %v771
        %v776 = vpack.c.bf16 %v772, %v772
        %v777 = vpack.c.bf16 %v773, %v773
        %v778 = vld [vmem:[#allocation2 + $0x1] sm:$0xff]
        %v779 = vld [vmem:[#allocation2 + $0x11] sm:$0xff]
        %v780 = vld [vmem:[#allocation2 + $0x21] sm:$0xff]
        %v781 = vld [vmem:[#allocation2 + $0x31] sm:$0xff]
        %v782 = vpack.c.bf16 %v778, %v778
        %v783 = vpack.c.bf16 %v779, %v779
        %v784 = vpack.c.bf16 %v780, %v780
        %v785 = vpack.c.bf16 %v781, %v781
        %v786 = vld [vmem:[#allocation2 + $0x2] sm:$0xff]
        %v787 = vld [vmem:[#allocation2 + $0x12] sm:$0xff]
        %v788 = vld [vmem:[#allocation2 + $0x22] sm:$0xff]
        %v789 = vld [vmem:[#allocation2 + $0x32] sm:$0xff]
        %v790 = vpack.c.bf16 %v786, %v786
        %v791 = vpack.c.bf16 %v787, %v787
        %v792 = vpack.c.bf16 %v788, %v788
        %v793 = vpack.c.bf16 %v789, %v789
        %s794 = scalar_lea.vmem [#allocation2], 16
        %v795 = vld [vmem:[%s794] sm:$0xff]
        %v796 = vld [vmem:[%s794 + $0x10] sm:$0xff]
        %v797 = vld [vmem:[%s794 + $0x20] sm:$0xff]
        %v798 = vld [vmem:[%s794 + $0x30] sm:$0xff]
        %v799 = vpack.c.bf16 %v795, %v795
        %v800 = vpack.c.bf16 %v796, %v796
        %v801 = vpack.c.bf16 %v797, %v797
        %v802 = vpack.c.bf16 %v798, %v798
        %v803 = vld [vmem:[%s794 + $0x1] sm:$0xff]
        %v804 = vld [vmem:[%s794 + $0x11] sm:$0xff]
        %v805 = vld [vmem:[%s794 + $0x21] sm:$0xff]
        %v806 = vld [vmem:[%s794 + $0x31] sm:$0xff]
        %v807 = vpack.c.bf16 %v803, %v803
        %v808 = vpack.c.bf16 %v804, %v804
        %v809 = vpack.c.bf16 %v805, %v805
        %v810 = vpack.c.bf16 %v806, %v806
        %v811 = vld [vmem:[%s794 + $0x2] sm:$0xff]
        %v812 = vld [vmem:[%s794 + $0x12] sm:$0xff]
        %v813 = vld [vmem:[%s794 + $0x22] sm:$0xff]
        %v814 = vld [vmem:[%s794 + $0x32] sm:$0xff]
        %v815 = vpack.c.bf16 %v811, %v811
        %v816 = vpack.c.bf16 %v812, %v812
        %v817 = vpack.c.bf16 %v813, %v813
        %v818 = vpack.c.bf16 %v814, %v814
        %s819 = scalar_lea.vmem [#allocation2], 32
        %v820 = vld [vmem:[%s819] sm:$0xff]
        %v821 = vld [vmem:[%s819 + $0x10] sm:$0xff]
        %v822 = vld [vmem:[%s819 + $0x20] sm:$0xff]
        %v823 = vld [vmem:[%s819 + $0x30] sm:$0xff]
        %v824 = vpack.c.bf16 %v820, %v820
        %v825 = vpack.c.bf16 %v821, %v821
        %v826 = vpack.c.bf16 %v822, %v822
        %v827 = vpack.c.bf16 %v823, %v823
        %v828 = vld [vmem:[%s819 + $0x1] sm:$0xff]
        %v829 = vld [vmem:[%s819 + $0x11] sm:$0xff]
        %v830 = vld [vmem:[%s819 + $0x21] sm:$0xff]
        %v831 = vld [vmem:[%s819 + $0x31] sm:$0xff]
        %v832 = vpack.c.bf16 %v828, %v828
        %v833 = vpack.c.bf16 %v829, %v829
        %v834 = vpack.c.bf16 %v830, %v830
        %v835 = vpack.c.bf16 %v831, %v831
        %v836 = vld [vmem:[%s819 + $0x2] sm:$0xff]
        %v837 = vld [vmem:[%s819 + $0x12] sm:$0xff]
        %v838 = vld [vmem:[%s819 + $0x22] sm:$0xff]
        %v839 = vld [vmem:[%s819 + $0x32] sm:$0xff]
        %v840 = vpack.c.bf16 %v836, %v836
        %v841 = vpack.c.bf16 %v837, %v837
        %v842 = vpack.c.bf16 %v838, %v838
        %v843 = vpack.c.bf16 %v839, %v839
        %v848 = vunpack.c.l.b16 %v774
        %v849 = vunpack.c.l.b16 %v775
        %v850 = vunpack.c.l.b16 %v776
        %v851 = vunpack.c.l.b16 %v777
        %v852 = vpack.c.b16 %v849, %v848
        %v853 = vpack.c.b16 %v851, %v850
        %v860 = vunpack.c.l.b16 %v782
        %v861 = vunpack.c.l.b16 %v783
        %v862 = vunpack.c.l.b16 %v784
        %v863 = vunpack.c.l.b16 %v785
        %v864 = vpack.c.b16 %v861, %v860
        %v865 = vpack.c.b16 %v863, %v862
        %v872 = vunpack.c.l.b16 %v790
        %v873 = vunpack.c.l.b16 %v791
        %v874 = vunpack.c.l.b16 %v792
        %v875 = vunpack.c.l.b16 %v793
        %v876 = vpack.c.b16 %v873, %v872
        %v877 = vpack.c.b16 %v875, %v874
        %v884 = vunpack.c.l.b16 %v799
        %v885 = vunpack.c.l.b16 %v800
        %v886 = vunpack.c.l.b16 %v801
        %v887 = vunpack.c.l.b16 %v802
        %v888 = vpack.c.b16 %v885, %v884
        %v889 = vpack.c.b16 %v887, %v886
        %v896 = vunpack.c.l.b16 %v807
        %v897 = vunpack.c.l.b16 %v808
        %v898 = vunpack.c.l.b16 %v809
        %v899 = vunpack.c.l.b16 %v810
        %v900 = vpack.c.b16 %v897, %v896
        %v901 = vpack.c.b16 %v899, %v898
        %v908 = vunpack.c.l.b16 %v815
        %v909 = vunpack.c.l.b16 %v816
        %v910 = vunpack.c.l.b16 %v817
        %v911 = vunpack.c.l.b16 %v818
        %v912 = vpack.c.b16 %v909, %v908
        %v913 = vpack.c.b16 %v911, %v910
        %v920 = vunpack.c.l.b16 %v824
        %v921 = vunpack.c.l.b16 %v825
        %v922 = vunpack.c.l.b16 %v826
        %v923 = vunpack.c.l.b16 %v827
        %v924 = vpack.c.b16 %v921, %v920
        %v925 = vpack.c.b16 %v923, %v922
        %v932 = vunpack.c.l.b16 %v832
        %v933 = vunpack.c.l.b16 %v833
        %v934 = vunpack.c.l.b16 %v834
        %v935 = vunpack.c.l.b16 %v835
        %v936 = vpack.c.b16 %v933, %v932
        %v937 = vpack.c.b16 %v935, %v934
        %v944 = vunpack.c.l.b16 %v840
        %v945 = vunpack.c.l.b16 %v841
        %v946 = vunpack.c.l.b16 %v842
        %v947 = vunpack.c.l.b16 %v843
        %v948 = vpack.c.b16 %v945, %v944
        %v949 = vpack.c.b16 %v947, %v946
        %v952 = vld [vmem:[#allocation11] sm:$0xf]
        %v953 = vld [vmem:[#allocation11 + $0x4] sm:$0xf]
        %v954 = vld [vmem:[#allocation11 + $0x8] sm:$0xf]
        %v955 = vld [vmem:[#allocation11 + $0xc] sm:$0xf]
        %v956 = vld [vmem:[#allocation11 + $0x10] sm:$0xf]
        %v957 = vld [vmem:[#allocation11 + $0x14] sm:$0xf]
        %v958 = vld [vmem:[#allocation11 + $0x18] sm:$0xf]
        %v959 = vld [vmem:[#allocation11 + $0x1c] sm:$0xf]
        %v960 = vld [vmem:[#allocation11 + $0x20] sm:$0xf]
        %v961 = vld [vmem:[#allocation11 + $0x24] sm:$0xf]
        %v962 = vld [vmem:[#allocation11 + $0x28] sm:$0xf]
        %v963 = vld [vmem:[#allocation11 + $0x2c] sm:$0xf]
        %v964 = vld [vmem:[#allocation11 + $0x30] sm:$0xf]
        %v965 = vld [vmem:[#allocation11 + $0x34] sm:$0xf]
        %v966 = vld [vmem:[#allocation11 + $0x38] sm:$0xf]
        %v967 = vld [vmem:[#allocation11 + $0x3c] sm:$0xf]
        %v968 = vld [vmem:[#allocation11 + $0x40] sm:$0xf]
        %v969 = vld [vmem:[#allocation11 + $0x44] sm:$0xf]
        %v970 = vld [vmem:[#allocation11 + $0x48] sm:$0xf]
        %v971 = vld [vmem:[#allocation11 + $0x4c] sm:$0xf]
        %v972 = vld [vmem:[#allocation11 + $0x50] sm:$0xf]
        %v973 = vld [vmem:[#allocation11 + $0x54] sm:$0xf]
        %v974 = vld [vmem:[#allocation11 + $0x58] sm:$0xf]
        %v975 = vld [vmem:[#allocation11 + $0x5c] sm:$0xf]
        %v976 = vld [vmem:[#allocation11 + $0x60] sm:$0xf]
        %v977 = vld [vmem:[#allocation11 + $0x64] sm:$0xf]
        %v978 = vld [vmem:[#allocation11 + $0x68] sm:$0xf]
        %v979 = vld [vmem:[#allocation11 + $0x6c] sm:$0xf]
        %v980 = vld [vmem:[#allocation11 + $0x70] sm:$0xf]
        %v981 = vld [vmem:[#allocation11 + $0x74] sm:$0xf]
        %v982 = vld [vmem:[#allocation11 + $0x78] sm:$0xf]
        %v983 = vld [vmem:[#allocation11 + $0x7c] sm:$0xf]
        %v984 = vld [vmem:[#allocation11 + $0x80] sm:$0xf]
        %v985 = vld [vmem:[#allocation11 + $0x84] sm:$0xf]
        %v986 = vld [vmem:[#allocation11 + $0x88] sm:$0xf]
        %v987 = vld [vmem:[#allocation11 + $0x8c] sm:$0xf]
        %v988 = vld [vmem:[#allocation11 + $0x90] sm:$0xf]
        %v989 = vld [vmem:[#allocation11 + $0x94] sm:$0xf]
        %v990 = vld [vmem:[#allocation11 + $0x98] sm:$0xf]
        %v991 = vld [vmem:[#allocation11 + $0x9c] sm:$0xf]
        %v992 = vld [vmem:[#allocation11 + $0xa0] sm:$0xf]
        %v993 = vld [vmem:[#allocation11 + $0xa4] sm:$0xf]
        %v994 = vld [vmem:[#allocation11 + $0xa8] sm:$0xf]
        %v995 = vld [vmem:[#allocation11 + $0xac] sm:$0xf]
        %v996 = vld [vmem:[#allocation11 + $0xb0] sm:$0xf]
        %v997 = vld [vmem:[#allocation11 + $0xb4] sm:$0xf]
        %v998 = vld [vmem:[#allocation11 + $0xb8] sm:$0xf]
        %v999 = vld [vmem:[#allocation11 + $0xbc] sm:$0xf]
        %v1000 = vld [vmem:[#allocation11 + $0xc0] sm:$0xf]
        %v1001 = vld [vmem:[#allocation11 + $0xc4] sm:$0xf]
        %v1002 = vld [vmem:[#allocation11 + $0xc8] sm:$0xf]
        %v1003 = vld [vmem:[#allocation11 + $0xcc] sm:$0xf]
        %v1004 = vld [vmem:[#allocation11 + $0xd0] sm:$0xf]
        %v1005 = vld [vmem:[#allocation11 + $0xd4] sm:$0xf]
        %v1006 = vld [vmem:[#allocation11 + $0xd8] sm:$0xf]
        %v1007 = vld [vmem:[#allocation11 + $0xdc] sm:$0xf]
        %v1008 = vld [vmem:[#allocation11 + $0xe0] sm:$0xf]
        %v1009 = vld [vmem:[#allocation11 + $0xe4] sm:$0xf]
        %v1010 = vld [vmem:[#allocation11 + $0xe8] sm:$0xf]
        %v1011 = vld [vmem:[#allocation11 + $0xec] sm:$0xf]
        %v1012 = vld [vmem:[#allocation11 + $0xf0] sm:$0xf]
        %v1013 = vld [vmem:[#allocation11 + $0xf4] sm:$0xf]
        %v1014 = vld [vmem:[#allocation11 + $0xf8] sm:$0xf]
        %v1015 = vld [vmem:[#allocation11 + $0xfc] sm:$0xf]
        %v1016 = vld [vmem:[#allocation11 + $0x100] sm:$0xf]
        %v1017 = vld [vmem:[#allocation11 + $0x104] sm:$0xf]
        %v1018 = vld [vmem:[#allocation11 + $0x108] sm:$0xf]
        %v1019 = vld [vmem:[#allocation11 + $0x10c] sm:$0xf]
        %v1020 = vld [vmem:[#allocation11 + $0x110] sm:$0xf]
        %v1021 = vld [vmem:[#allocation11 + $0x114] sm:$0xf]
        %v1022 = vld [vmem:[#allocation11 + $0x118] sm:$0xf]
        %v1023 = vld [vmem:[#allocation11 + $0x11c] sm:$0xf]
        %v1024 = vld [vmem:[#allocation11 + $0x120] sm:$0xf]
        %v1025 = vld [vmem:[#allocation11 + $0x124] sm:$0xf]
        %v1026 = vld [vmem:[#allocation11 + $0x128] sm:$0xf]
        %v1027 = vld [vmem:[#allocation11 + $0x12c] sm:$0xf]
        %v1028 = vld [vmem:[#allocation11 + $0x130] sm:$0xf]
        %v1029 = vld [vmem:[#allocation11 + $0x134] sm:$0xf]
        %v1030 = vld [vmem:[#allocation11 + $0x138] sm:$0xf]
        %v1031 = vld [vmem:[#allocation11 + $0x13c] sm:$0xf]
        %v1032 = vld [vmem:[#allocation11 + $0x140] sm:$0xf]
        %v1033 = vld [vmem:[#allocation11 + $0x144] sm:$0xf]
        %v1034 = vld [vmem:[#allocation11 + $0x148] sm:$0xf]
        %v1035 = vld [vmem:[#allocation11 + $0x14c] sm:$0xf]
        %v1036 = vld [vmem:[#allocation11 + $0x150] sm:$0xf]
        %v1037 = vld [vmem:[#allocation11 + $0x154] sm:$0xf]
        %v1038 = vld [vmem:[#allocation11 + $0x158] sm:$0xf]
        %v1039 = vld [vmem:[#allocation11 + $0x15c] sm:$0xf]
        %v1040 = vld [vmem:[#allocation11 + $0x160] sm:$0xf]
        %v1041 = vld [vmem:[#allocation11 + $0x164] sm:$0xf]
        %v1042 = vld [vmem:[#allocation11 + $0x168] sm:$0xf]
        %v1043 = vld [vmem:[#allocation11 + $0x16c] sm:$0xf]
        %v1044 = vld [vmem:[#allocation11 + $0x170] sm:$0xf]
        %v1045 = vld [vmem:[#allocation11 + $0x174] sm:$0xf]
        %v1046 = vld [vmem:[#allocation11 + $0x178] sm:$0xf]
        %v1047 = vld [vmem:[#allocation11 + $0x17c] sm:$0xf]
        %v1048 = vld [vmem:[#allocation11 + $0x180] sm:$0xf]
        %v1049 = vld [vmem:[#allocation11 + $0x184] sm:$0xf]
        %v1050 = vld [vmem:[#allocation11 + $0x188] sm:$0xf]
        %v1051 = vld [vmem:[#allocation11 + $0x18c] sm:$0xf]
        %v1052 = vld [vmem:[#allocation11 + $0x190] sm:$0xf]
        %v1053 = vld [vmem:[#allocation11 + $0x194] sm:$0xf]
        %v1054 = vld [vmem:[#allocation11 + $0x198] sm:$0xf]
        %v1055 = vld [vmem:[#allocation11 + $0x19c] sm:$0xf]
        %v1056 = vld [vmem:[#allocation11 + $0x1a0] sm:$0xf]
        %v1057 = vld [vmem:[#allocation11 + $0x1a4] sm:$0xf]
        %v1058 = vld [vmem:[#allocation11 + $0x1a8] sm:$0xf]
        %v1059 = vld [vmem:[#allocation11 + $0x1ac] sm:$0xf]
        %v1060 = vld [vmem:[#allocation11 + $0x1b0] sm:$0xf]
        %v1061 = vld [vmem:[#allocation11 + $0x1b4] sm:$0xf]
        %v1062 = vld [vmem:[#allocation11 + $0x1b8] sm:$0xf]
        %v1063 = vld [vmem:[#allocation11 + $0x1bc] sm:$0xf]
        %v1064 = vld [vmem:[#allocation11 + $0x1c0] sm:$0xf]
        %v1065 = vld [vmem:[#allocation11 + $0x1c4] sm:$0xf]
        %v1066 = vld [vmem:[#allocation11 + $0x1c8] sm:$0xf]
        %v1067 = vld [vmem:[#allocation11 + $0x1cc] sm:$0xf]
        %v1068 = vld [vmem:[#allocation11 + $0x1d0] sm:$0xf]
        %v1069 = vld [vmem:[#allocation11 + $0x1d4] sm:$0xf]
        %v1070 = vld [vmem:[#allocation11 + $0x1d8] sm:$0xf]
        %v1071 = vld [vmem:[#allocation11 + $0x1dc] sm:$0xf]
        %v1072 = vld [vmem:[#allocation11 + $0x1e0] sm:$0xf]
        %v1073 = vld [vmem:[#allocation11 + $0x1e4] sm:$0xf]
        %v1074 = vld [vmem:[#allocation11 + $0x1e8] sm:$0xf]
        %v1075 = vld [vmem:[#allocation11 + $0x1ec] sm:$0xf]
        %v1076 = vld [vmem:[#allocation11 + $0x1f0] sm:$0xf]
        %v1077 = vld [vmem:[#allocation11 + $0x1f4] sm:$0xf]
        %v1078 = vld [vmem:[#allocation11 + $0x1f8] sm:$0xf]
        %v1079 = vld [vmem:[#allocation11 + $0x1fc] sm:$0xf]
        %v1080 = vld [vmem:[#allocation11 + $0x200] sm:$0xf]
        %v1081 = vld [vmem:[#allocation11 + $0x204] sm:$0xf]
        %v1082 = vld [vmem:[#allocation11 + $0x208] sm:$0xf]
        %v1083 = vld [vmem:[#allocation11 + $0x20c] sm:$0xf]
        %v1084 = vld [vmem:[#allocation11 + $0x210] sm:$0xf]
        %v1085 = vld [vmem:[#allocation11 + $0x214] sm:$0xf]
        %v1086 = vld [vmem:[#allocation11 + $0x218] sm:$0xf]
        %v1087 = vld [vmem:[#allocation11 + $0x21c] sm:$0xf]
        %v1088 = vld [vmem:[#allocation11 + $0x220] sm:$0xf]
        %v1089 = vld [vmem:[#allocation11 + $0x224] sm:$0xf]
        %v1090 = vld [vmem:[#allocation11 + $0x228] sm:$0xf]
        %v1091 = vld [vmem:[#allocation11 + $0x22c] sm:$0xf]
        %v1092 = vld [vmem:[#allocation11 + $0x230] sm:$0xf]
        %v1093 = vld [vmem:[#allocation11 + $0x234] sm:$0xf]
        %v1094 = vld [vmem:[#allocation11 + $0x238] sm:$0xf]
        %v1095 = vld [vmem:[#allocation11 + $0x23c] sm:$0xf]
        %v1096 = vld [vmem:[%s6] sm:$0x1]
        %v1098 = vlaneseq
        %v1099 = vshrl.u32 %v1098, 7
        %v1100 = vsub.s32 0, %v1099
        %v1101 = vrot.slane %v1096, %v1100
        %v1247 = vunpack.c.l.b16 %v952
        %v1248 = vunpack.c.l.b16 %v953
        %v1249 = vunpack.c.l.b16 %v954
        %v1250 = vunpack.c.l.b16 %v955
        %v1251 = vunpack.c.l.b16 %v956
        %v1252 = vunpack.c.l.b16 %v957
        %v1253 = vunpack.c.l.b16 %v958
        %v1254 = vunpack.c.l.b16 %v959
        %v1255 = vunpack.c.l.b16 %v960
        %v1256 = vunpack.c.l.b16 %v961
        %v1257 = vunpack.c.l.b16 %v962
        %v1258 = vunpack.c.l.b16 %v963
        %v1259 = vunpack.c.l.b16 %v964
        %v1260 = vunpack.c.l.b16 %v965
        %v1261 = vunpack.c.l.b16 %v966
        %v1262 = vunpack.c.l.b16 %v967
        %v1263 = vunpack.c.l.b16 %v968
        %v1264 = vunpack.c.l.b16 %v969
        %v1265 = vunpack.c.l.b16 %v970
        %v1266 = vunpack.c.l.b16 %v971
        %v1267 = vunpack.c.l.b16 %v972
        %v1268 = vunpack.c.l.b16 %v973
        %v1269 = vunpack.c.l.b16 %v974
        %v1270 = vunpack.c.l.b16 %v975
        %v1271 = vunpack.c.l.b16 %v976
        %v1272 = vunpack.c.l.b16 %v977
        %v1273 = vunpack.c.l.b16 %v978
        %v1274 = vunpack.c.l.b16 %v979
        %v1275 = vunpack.c.l.b16 %v980
        %v1276 = vunpack.c.l.b16 %v981
        %v1277 = vunpack.c.l.b16 %v982
        %v1278 = vunpack.c.l.b16 %v983
        %v1279 = vunpack.c.l.b16 %v984
        %v1280 = vunpack.c.l.b16 %v985
        %v1281 = vunpack.c.l.b16 %v986
        %v1282 = vunpack.c.l.b16 %v987
        %v1283 = vunpack.c.l.b16 %v988
        %v1284 = vunpack.c.l.b16 %v989
        %v1285 = vunpack.c.l.b16 %v990
        %v1286 = vunpack.c.l.b16 %v991
        %v1287 = vunpack.c.l.b16 %v992
        %v1288 = vunpack.c.l.b16 %v993
        %v1289 = vunpack.c.l.b16 %v994
        %v1290 = vunpack.c.l.b16 %v995
        %v1291 = vunpack.c.l.b16 %v996
        %v1292 = vunpack.c.l.b16 %v997
        %v1293 = vunpack.c.l.b16 %v998
        %v1294 = vunpack.c.l.b16 %v999
        %v1295 = vunpack.c.l.b16 %v1000
        %v1296 = vunpack.c.l.b16 %v1001
        %v1297 = vunpack.c.l.b16 %v1002
        %v1298 = vunpack.c.l.b16 %v1003
        %v1299 = vunpack.c.l.b16 %v1004
        %v1300 = vunpack.c.l.b16 %v1005
        %v1301 = vunpack.c.l.b16 %v1006
        %v1302 = vunpack.c.l.b16 %v1007
        %v1303 = vunpack.c.l.b16 %v1008
        %v1304 = vunpack.c.l.b16 %v1009
        %v1305 = vunpack.c.l.b16 %v1010
        %v1306 = vunpack.c.l.b16 %v1011
        %v1307 = vunpack.c.l.b16 %v1012
        %v1308 = vunpack.c.l.b16 %v1013
        %v1309 = vunpack.c.l.b16 %v1014
        %v1310 = vunpack.c.l.b16 %v1015
        %v1311 = vunpack.c.l.b16 %v1016
        %v1312 = vunpack.c.l.b16 %v1017
        %v1313 = vunpack.c.l.b16 %v1018
        %v1314 = vunpack.c.l.b16 %v1019
        %v1315 = vunpack.c.l.b16 %v1020
        %v1316 = vunpack.c.l.b16 %v1021
        %v1317 = vunpack.c.l.b16 %v1022
        %v1318 = vunpack.c.l.b16 %v1023
        %v1319 = vunpack.c.l.b16 %v1024
        %v1320 = vunpack.c.l.b16 %v1025
        %v1321 = vunpack.c.l.b16 %v1026
        %v1322 = vunpack.c.l.b16 %v1027
        %v1323 = vunpack.c.l.b16 %v1028
        %v1324 = vunpack.c.l.b16 %v1029
        %v1325 = vunpack.c.l.b16 %v1030
        %v1326 = vunpack.c.l.b16 %v1031
        %v1327 = vunpack.c.l.b16 %v1032
        %v1328 = vunpack.c.l.b16 %v1033
        %v1329 = vunpack.c.l.b16 %v1034
        %v1330 = vunpack.c.l.b16 %v1035
        %v1331 = vunpack.c.l.b16 %v1036
        %v1332 = vunpack.c.l.b16 %v1037
        %v1333 = vunpack.c.l.b16 %v1038
        %v1334 = vunpack.c.l.b16 %v1039
        %v1335 = vunpack.c.l.b16 %v1040
        %v1336 = vunpack.c.l.b16 %v1041
        %v1337 = vunpack.c.l.b16 %v1042
        %v1338 = vunpack.c.l.b16 %v1043
        %v1339 = vunpack.c.l.b16 %v1044
        %v1340 = vunpack.c.l.b16 %v1045
        %v1341 = vunpack.c.l.b16 %v1046
        %v1342 = vunpack.c.l.b16 %v1047
        %v1343 = vunpack.c.l.b16 %v1048
        %v1344 = vunpack.c.l.b16 %v1049
        %v1345 = vunpack.c.l.b16 %v1050
        %v1346 = vunpack.c.l.b16 %v1051
        %v1347 = vunpack.c.l.b16 %v1052
        %v1348 = vunpack.c.l.b16 %v1053
        %v1349 = vunpack.c.l.b16 %v1054
        %v1350 = vunpack.c.l.b16 %v1055
        %v1351 = vunpack.c.l.b16 %v1056
        %v1352 = vunpack.c.l.b16 %v1057
        %v1353 = vunpack.c.l.b16 %v1058
        %v1354 = vunpack.c.l.b16 %v1059
        %v1355 = vunpack.c.l.b16 %v1060
        %v1356 = vunpack.c.l.b16 %v1061
        %v1357 = vunpack.c.l.b16 %v1062
        %v1358 = vunpack.c.l.b16 %v1063
        %v1359 = vunpack.c.l.b16 %v1064
        %v1360 = vunpack.c.l.b16 %v1065
        %v1361 = vunpack.c.l.b16 %v1066
        %v1362 = vunpack.c.l.b16 %v1067
        %v1363 = vunpack.c.l.b16 %v1068
        %v1364 = vunpack.c.l.b16 %v1069
        %v1365 = vunpack.c.l.b16 %v1070
        %v1366 = vunpack.c.l.b16 %v1071
        %v1367 = vunpack.c.l.b16 %v1072
        %v1368 = vunpack.c.l.b16 %v1073
        %v1369 = vunpack.c.l.b16 %v1074
        %v1370 = vunpack.c.l.b16 %v1075
        %v1371 = vunpack.c.l.b16 %v1076
        %v1372 = vunpack.c.l.b16 %v1077
        %v1373 = vunpack.c.l.b16 %v1078
        %v1374 = vunpack.c.l.b16 %v1079
        %v1375 = vunpack.c.l.b16 %v1080
        %v1376 = vunpack.c.l.b16 %v1081
        %v1377 = vunpack.c.l.b16 %v1082
        %v1378 = vunpack.c.l.b16 %v1083
        %v1379 = vunpack.c.l.b16 %v1084
        %v1380 = vunpack.c.l.b16 %v1085
        %v1381 = vunpack.c.l.b16 %v1086
        %v1382 = vunpack.c.l.b16 %v1087
        %v1383 = vunpack.c.l.b16 %v1088
        %v1384 = vunpack.c.l.b16 %v1089
        %v1385 = vunpack.c.l.b16 %v1090
        %v1386 = vunpack.c.l.b16 %v1091
        %v1387 = vunpack.c.l.b16 %v1092
        %v1388 = vunpack.c.l.b16 %v1093
        %v1389 = vunpack.c.l.b16 %v1094
        %v1390 = vunpack.c.l.b16 %v1095
        %v1391 = vpack.c.b16 %v1248, %v1247
        %v1392 = vpack.c.b16 %v1250, %v1249
        %v1393 = vpack.c.b16 %v1252, %v1251
        %v1394 = vpack.c.b16 %v1254, %v1253
        %v1395 = vpack.c.b16 %v1256, %v1255
        %v1396 = vpack.c.b16 %v1258, %v1257
        %v1397 = vpack.c.b16 %v1260, %v1259
        %v1398 = vpack.c.b16 %v1262, %v1261
        %v1399 = vpack.c.b16 %v1264, %v1263
        %v1400 = vpack.c.b16 %v1266, %v1265
        %v1401 = vpack.c.b16 %v1268, %v1267
        %v1402 = vpack.c.b16 %v1270, %v1269
        %v1403 = vpack.c.b16 %v1272, %v1271
        %v1404 = vpack.c.b16 %v1274, %v1273
        %v1405 = vpack.c.b16 %v1276, %v1275
        %v1406 = vpack.c.b16 %v1278, %v1277
        %v1407 = vpack.c.b16 %v1280, %v1279
        %v1408 = vpack.c.b16 %v1282, %v1281
        %v1409 = vpack.c.b16 %v1284, %v1283
        %v1410 = vpack.c.b16 %v1286, %v1285
        %v1411 = vpack.c.b16 %v1288, %v1287
        %v1412 = vpack.c.b16 %v1290, %v1289
        %v1413 = vpack.c.b16 %v1292, %v1291
        %v1414 = vpack.c.b16 %v1294, %v1293
        %v1415 = vpack.c.b16 %v1296, %v1295
        %v1416 = vpack.c.b16 %v1298, %v1297
        %v1417 = vpack.c.b16 %v1300, %v1299
        %v1418 = vpack.c.b16 %v1302, %v1301
        %v1419 = vpack.c.b16 %v1304, %v1303
        %v1420 = vpack.c.b16 %v1306, %v1305
        %v1421 = vpack.c.b16 %v1308, %v1307
        %v1422 = vpack.c.b16 %v1310, %v1309
        %v1423 = vpack.c.b16 %v1312, %v1311
        %v1424 = vpack.c.b16 %v1314, %v1313
        %v1425 = vpack.c.b16 %v1316, %v1315
        %v1426 = vpack.c.b16 %v1318, %v1317
        %v1427 = vpack.c.b16 %v1320, %v1319
        %v1428 = vpack.c.b16 %v1322, %v1321
        %v1429 = vpack.c.b16 %v1324, %v1323
        %v1430 = vpack.c.b16 %v1326, %v1325
        %v1431 = vpack.c.b16 %v1328, %v1327
        %v1432 = vpack.c.b16 %v1330, %v1329
        %v1433 = vpack.c.b16 %v1332, %v1331
        %v1434 = vpack.c.b16 %v1334, %v1333
        %v1435 = vpack.c.b16 %v1336, %v1335
        %v1436 = vpack.c.b16 %v1338, %v1337
        %v1437 = vpack.c.b16 %v1340, %v1339
        %v1438 = vpack.c.b16 %v1342, %v1341
        %v1439 = vpack.c.b16 %v1344, %v1343
        %v1440 = vpack.c.b16 %v1346, %v1345
        %v1441 = vpack.c.b16 %v1348, %v1347
        %v1442 = vpack.c.b16 %v1350, %v1349
        %v1443 = vpack.c.b16 %v1352, %v1351
        %v1444 = vpack.c.b16 %v1354, %v1353
        %v1445 = vpack.c.b16 %v1356, %v1355
        %v1446 = vpack.c.b16 %v1358, %v1357
        %v1447 = vpack.c.b16 %v1360, %v1359
        %v1448 = vpack.c.b16 %v1362, %v1361
        %v1449 = vpack.c.b16 %v1364, %v1363
        %v1450 = vpack.c.b16 %v1366, %v1365
        %v1451 = vpack.c.b16 %v1368, %v1367
        %v1452 = vpack.c.b16 %v1370, %v1369
        %v1453 = vpack.c.b16 %v1372, %v1371
        %v1454 = vpack.c.b16 %v1374, %v1373
        %v1455 = vpack.c.b16 %v1376, %v1375
        %v1456 = vpack.c.b16 %v1378, %v1377
        %v1457 = vpack.c.b16 %v1380, %v1379
        %v1458 = vpack.c.b16 %v1382, %v1381
        %v1459 = vpack.c.b16 %v1384, %v1383
        %v1460 = vpack.c.b16 %v1386, %v1385
        %v1461 = vpack.c.b16 %v1388, %v1387
        %v1462 = vpack.c.b16 %v1390, %v1389
        %1535 = vmatprep.subr.bf16.mxu0 0
        %1536 = vmatpush1.bf16.msra.mxu0 %v1391
        %1537 = vmatprep.subr.bf16.mxu0 0
        %1538 = vmatpush1.bf16.msra.mxu0 %v1392
        %1539 = vmatprep.subr.bf16.mxu0 0
        %1540 = vmatpush1.bf16.msra.mxu0 %v1393
        %1541 = vmatprep.subr.bf16.mxu0 0
        %1542 = vmatpush1.bf16.msra.mxu0 %v1394
        %1543 = vmatprep.subr.bf16.mxu0 0
        %1544 = vmatpush1.bf16.msra.mxu0 %v1395
        %1545 = vmatprep.subr.bf16.mxu0 0
        %1546 = vmatpush1.bf16.msra.mxu0 %v1396
        %1547 = vmatprep.subr.bf16.mxu0 0
        %1548 = vmatpush1.bf16.msra.mxu0 %v1397
        %1549 = vmatprep.subr.bf16.mxu0 0
        %1550 = vmatpush1.bf16.msra.mxu0 %v1398
        %1551 = vmatprep.subr.bf16.mxu0 0
        %1552 = vmatpush1.bf16.msra.mxu0 %v1399
        %1553 = vmatprep.subr.bf16.mxu0 0
        %1554 = vmatpush1.bf16.msra.mxu0 %v1400
        %1555 = vmatprep.subr.bf16.mxu0 0
        %1556 = vmatpush1.bf16.msra.mxu0 %v1401
        %1557 = vmatprep.subr.bf16.mxu0 0
        %1558 = vmatpush1.bf16.msra.mxu0 %v1402
        %1559 = vmatprep.subr.bf16.mxu0 0
        %1560 = vmatpush1.bf16.msra.mxu0 %v1403
        %1561 = vmatprep.subr.bf16.mxu0 0
        %1562 = vmatpush1.bf16.msra.mxu0 %v1404
        %1563 = vmatprep.subr.bf16.mxu0 0
        %1564 = vmatpush1.bf16.msra.mxu0 %v1405
        %1565 = vmatprep.subr.bf16.mxu0 0
        %1566 = vmatpush1.bf16.msra.mxu0 %v1406
        %1567 = vmatprep.mubr.bf16.mxu0 %v864
        %1568 = vmatmul.mubr.bf16.gmra.mrb[0].mxu0 %v852
        %v1569 = vpop.f32.mrb[0].mxu0
        %v1570 = vadd.f32 %v1101, %v1569
        %v1571 = vpop.f32.mrb[0].mxu0
        %v1572 = vpop.f32.mrb[0].mxu0
        %v1573 = vadd.f32 %v1101, %v1572
        %v1574 = vpop.f32.mrb[0].mxu0
        %1575 = vmatprep.mubr.bf16.mxu0 %v865
        %1576 = vmatmul.mubr.bf16.gmra.mrb[0].mxu0 %v853
        %v1577 = vpop.f32.mrb[0].mxu0
        %v1578 = vadd.f32 %v1101, %v1577
        %v1579 = vpop.f32.mrb[0].mxu0
        %v1580 = vpop.f32.mrb[0].mxu0
        %v1581 = vadd.f32 %v1101, %v1580
        %v1582 = vpop.f32.mrb[0].mxu0
        %1583 = vdwg.mxu0
        %1584 = vmatprep.subr.bf16.mxu0 0
        %1585 = vmatpush1.bf16.msra.mxu0 %v1407
        %1586 = vmatprep.subr.bf16.mxu0 0
        %1587 = vmatpush1.bf16.msra.mxu0 %v1408
        %1588 = vmatprep.subr.bf16.mxu0 0
        %1589 = vmatpush1.bf16.msra.mxu0 %v1409
        %1590 = vmatprep.subr.bf16.mxu0 0
        %1591 = vmatpush1.bf16.msra.mxu0 %v1410
        %1592 = vmatprep.subr.bf16.mxu0 0
        %1593 = vmatpush1.bf16.msra.mxu0 %v1411
        %1594 = vmatprep.subr.bf16.mxu0 0
        %1595 = vmatpush1.bf16.msra.mxu0 %v1412
        %1596 = vmatprep.subr.bf16.mxu0 0
        %1597 = vmatpush1.bf16.msra.mxu0 %v1413
        %1598 = vmatprep.subr.bf16.mxu0 0
        %1599 = vmatpush1.bf16.msra.mxu0 %v1414
        %1600 = vmatprep.subr.bf16.mxu0 0
        %1601 = vmatpush1.bf16.msra.mxu0 %v1415
        %1602 = vmatprep.subr.bf16.mxu0 0
        %1603 = vmatpush1.bf16.msra.mxu0 %v1416
        %1604 = vmatprep.subr.bf16.mxu0 0
        %1605 = vmatpush1.bf16.msra.mxu0 %v1417
        %1606 = vmatprep.subr.bf16.mxu0 0
        %1607 = vmatpush1.bf16.msra.mxu0 %v1418
        %1608 = vmatprep.subr.bf16.mxu0 0
        %1609 = vmatpush1.bf16.msra.mxu0 %v1419
        %1610 = vmatprep.subr.bf16.mxu0 0
        %1611 = vmatpush1.bf16.msra.mxu0 %v1420
        %1612 = vmatprep.subr.bf16.mxu0 0
        %1613 = vmatpush1.bf16.msra.mxu0 %v1421
        %1614 = vmatprep.subr.bf16.mxu0 0
        %1615 = vmatpush1.bf16.msra.mxu0 %v1422
        %1616 = vmatprep.mubr.bf16.mxu0 %v888
        %1617 = vmatmul.mubr.bf16.gmra.mrb[0].mxu0 %v876
        %v1618 = vpop.f32.mrb[0].mxu0
        %v1619 = vadd.f32 %v1570, %v1618
        %v1620 = vpop.f32.mrb[0].mxu0
        %v1621 = vpop.f32.mrb[0].mxu0
        %v1622 = vadd.f32 %v1573, %v1621
        %v1623 = vpop.f32.mrb[0].mxu0
        %1624 = vmatprep.mubr.bf16.mxu0 %v889
        %1625 = vmatmul.mubr.bf16.gmra.mrb[0].mxu0 %v877
        %v1626 = vpop.f32.mrb[0].mxu0
        %v1627 = vadd.f32 %v1578, %v1626
        %v1628 = vpop.f32.mrb[0].mxu0
        %v1629 = vpop.f32.mrb[0].mxu0
        %v1630 = vadd.f32 %v1581, %v1629
        %v1631 = vpop.f32.mrb[0].mxu0
        %1632 = vdwg.mxu0
        %1633 = vmatprep.subr.bf16.mxu0 0
        %1634 = vmatpush1.bf16.msra.mxu0 %v1423
        %1635 = vmatprep.subr.bf16.mxu0 0
        %1636 = vmatpush1.bf16.msra.mxu0 %v1424
        %1637 = vmatprep.subr.bf16.mxu0 0
        %1638 = vmatpush1.bf16.msra.mxu0 %v1425
        %1639 = vmatprep.subr.bf16.mxu0 0
        %1640 = vmatpush1.bf16.msra.mxu0 %v1426
        %1641 = vmatprep.subr.bf16.mxu0 0
        %1642 = vmatpush1.bf16.msra.mxu0 %v1427
        %1643 = vmatprep.subr.bf16.mxu0 0
        %1644 = vmatpush1.bf16.msra.mxu0 %v1428
        %1645 = vmatprep.subr.bf16.mxu0 0
        %1646 = vmatpush1.bf16.msra.mxu0 %v1429
        %1647 = vmatprep.subr.bf16.mxu0 0
        %1648 = vmatpush1.bf16.msra.mxu0 %v1430
        %1649 = vmatprep.subr.bf16.mxu0 0
        %1650 = vmatpush1.bf16.msra.mxu0 %v1431
        %1651 = vmatprep.subr.bf16.mxu0 0
        %1652 = vmatpush1.bf16.msra.mxu0 %v1432
        %1653 = vmatprep.subr.bf16.mxu0 0
        %1654 = vmatpush1.bf16.msra.mxu0 %v1433
        %1655 = vmatprep.subr.bf16.mxu0 0
        %1656 = vmatpush1.bf16.msra.mxu0 %v1434
        %1657 = vmatprep.subr.bf16.mxu0 0
        %1658 = vmatpush1.bf16.msra.mxu0 %v1435
        %1659 = vmatprep.subr.bf16.mxu0 0
        %1660 = vmatpush1.bf16.msra.mxu0 %v1436
        %1661 = vmatprep.subr.bf16.mxu0 0
        %1662 = vmatpush1.bf16.msra.mxu0 %v1437
        %1663 = vmatprep.subr.bf16.mxu0 0
        %1664 = vmatpush1.bf16.msra.mxu0 %v1438
        %1665 = vmatprep.mubr.bf16.mxu0 %v912
        %1666 = vmatmul.mubr.bf16.gmra.mrb[0].mxu0 %v900
        %v1667 = vpop.f32.mrb[0].mxu0
        %v1668 = vadd.f32 %v1619, %v1667
        %v1669 = vpop.f32.mrb[0].mxu0
        %v1670 = vpop.f32.mrb[0].mxu0
        %v1671 = vadd.f32 %v1622, %v1670
        %v1672 = vpop.f32.mrb[0].mxu0
        %1673 = vmatprep.mubr.bf16.mxu0 %v913
        %1674 = vmatmul.mubr.bf16.gmra.mrb[0].mxu0 %v901
        %v1675 = vpop.f32.mrb[0].mxu0
        %v1676 = vadd.f32 %v1627, %v1675
        %v1677 = vpop.f32.mrb[0].mxu0
        %v1678 = vpop.f32.mrb[0].mxu0
        %v1679 = vadd.f32 %v1630, %v1678
        %v1680 = vpop.f32.mrb[0].mxu0
        %1681 = vdwg.mxu0
        %1682 = vmatprep.subr.bf16.mxu0 0
        %1683 = vmatpush1.bf16.msra.mxu0 %v1439
        %1684 = vmatprep.subr.bf16.mxu0 0
        %1685 = vmatpush1.bf16.msra.mxu0 %v1440
        %1686 = vmatprep.subr.bf16.mxu0 0
        %1687 = vmatpush1.bf16.msra.mxu0 %v1441
        %1688 = vmatprep.subr.bf16.mxu0 0
        %1689 = vmatpush1.bf16.msra.mxu0 %v1442
        %1690 = vmatprep.subr.bf16.mxu0 0
        %1691 = vmatpush1.bf16.msra.mxu0 %v1443
        %1692 = vmatprep.subr.bf16.mxu0 0
        %1693 = vmatpush1.bf16.msra.mxu0 %v1444
        %1694 = vmatprep.subr.bf16.mxu0 0
        %1695 = vmatpush1.bf16.msra.mxu0 %v1445
        %1696 = vmatprep.subr.bf16.mxu0 0
        %1697 = vmatpush1.bf16.msra.mxu0 %v1446
        %1698 = vmatprep.subr.bf16.mxu0 0
        %1699 = vmatpush1.bf16.msra.mxu0 %v1447
        %1700 = vmatprep.subr.bf16.mxu0 0
        %1701 = vmatpush1.bf16.msra.mxu0 %v1448
        %1702 = vmatprep.subr.bf16.mxu0 0
        %1703 = vmatpush1.bf16.msra.mxu0 %v1449
        %1704 = vmatprep.subr.bf16.mxu0 0
        %1705 = vmatpush1.bf16.msra.mxu0 %v1450
        %1706 = vmatprep.subr.bf16.mxu0 0
        %1707 = vmatpush1.bf16.msra.mxu0 %v1451
        %1708 = vmatprep.subr.bf16.mxu0 0
        %1709 = vmatpush1.bf16.msra.mxu0 %v1452
        %1710 = vmatprep.subr.bf16.mxu0 0
        %1711 = vmatpush1.bf16.msra.mxu0 %v1453
        %1712 = vmatprep.subr.bf16.mxu0 0
        %1713 = vmatpush1.bf16.msra.mxu0 %v1454
        %1714 = vmatprep.mubr.bf16.mxu0 %v936
        %1715 = vmatmul.mubr.bf16.gmra.mrb[0].mxu0 %v924
        %v1716 = vpop.f32.mrb[0].mxu0
        %v1717 = vadd.f32 %v1668, %v1716
        %v1718 = vpop.f32.mrb[0].mxu0
        %v1719 = vpop.f32.mrb[0].mxu0
        %v1720 = vadd.f32 %v1671, %v1719
        %v1721 = vpop.f32.mrb[0].mxu0
        %1722 = vmatprep.mubr.bf16.mxu0 %v937
        %1723 = vmatmul.mubr.bf16.gmra.mrb[0].mxu0 %v925
        %v1724 = vpop.f32.mrb[0].mxu0
        %v1725 = vadd.f32 %v1676, %v1724
        %v1726 = vpop.f32.mrb[0].mxu0
        %v1727 = vpop.f32.mrb[0].mxu0
        %v1728 = vadd.f32 %v1679, %v1727
        %v1729 = vpop.f32.mrb[0].mxu0
        %1730 = vdwg.mxu0
        %1731 = vmatprep.subr.bf16.mxu0 0
        %1732 = vmatpush1.bf16.msra.mxu0 %v1455
        %1733 = vmatprep.subr.bf16.mxu0 0
        %1734 = vmatpush1.bf16.msra.mxu0 %v1456
        %1735 = vmatprep.subr.bf16.mxu0 0
        %1736 = vmatpush1.bf16.msra.mxu0 %v1457
        %1737 = vmatprep.subr.bf16.mxu0 0
        %1738 = vmatpush1.bf16.msra.mxu0 %v1458
        %1739 = vmatprep.subr.bf16.mxu0 0
        %1740 = vmatpush1.bf16.msra.mxu0 %v1459
        %1741 = vmatprep.subr.bf16.mxu0 0
        %1742 = vmatpush1.bf16.msra.mxu0 %v1460
        %1743 = vmatprep.subr.bf16.mxu0 0
        %1744 = vmatpush1.bf16.msra.mxu0 %v1461
        %1745 = vmatprep.subr.bf16.mxu0 0
        %1746 = vmatpush1.bf16.msra.mxu0 %v1462
        %1747 = vmatprep.subr.bf16.mxu0 0
        %1748 = vmatpush1.bf16.msra.mxu0 0
        %1749 = vmatprep.subr.bf16.mxu0 0
        %1750 = vmatpush1.bf16.msra.mxu0 0
        %1751 = vmatprep.subr.bf16.mxu0 0
        %1752 = vmatpush1.bf16.msra.mxu0 0
        %1753 = vmatprep.subr.bf16.mxu0 0
        %1754 = vmatpush1.bf16.msra.mxu0 0
        %1755 = vmatprep.subr.bf16.mxu0 0
        %1756 = vmatpush1.bf16.msra.mxu0 0
        %1757 = vmatprep.subr.bf16.mxu0 0
        %1758 = vmatpush1.bf16.msra.mxu0 0
        %1759 = vmatprep.subr.bf16.mxu0 0
        %1760 = vmatpush1.bf16.msra.mxu0 0
        %1761 = vmatprep.subr.bf16.mxu0 0
        %1762 = vmatpush1.bf16.msra.mxu0 0
        %1763 = vmatprep.mubr.bf16.mxu0 0
        %1764 = vmatmul.mubr.bf16.gmra.mrb[0].mxu0 %v948
        %v1765 = vpop.f32.mrb[0].mxu0
        %v1766 = vadd.f32 %v1717, %v1765
        %v1767 = vpop.f32.mrb[0].mxu0
        %v1768 = vpop.f32.mrb[0].mxu0
        %v1769 = vadd.f32 %v1720, %v1768
        %v1770 = vpop.f32.mrb[0].mxu0
        %1771 = vmatprep.mubr.bf16.mxu0 0
        %1772 = vmatmul.mubr.bf16.gmra.mrb[0].mxu0 %v949
        %v1773 = vpop.f32.mrb[0].mxu0
        %v1774 = vadd.f32 %v1725, %v1773
        %v1775 = vpop.f32.mrb[0].mxu0
        %v1776 = vpop.f32.mrb[0].mxu0
        %v1777 = vadd.f32 %v1728, %v1776
        %v1778 = vpop.f32.mrb[0].mxu0
        %1779 = vdwg.mxu0
        %v1780 = vmax.f32 %v1766, 0.0
        %v1781 = vmax.f32 %v1769, 0.0
        %v1782 = vmax.f32 %v1774, 0.0
        %v1783 = vmax.f32 %v1777, 0.0
        %v1784 = vpack.c.bf16 %v1781, %v1780
        %v1785 = vpack.c.bf16 %v1783, %v1782
        %v1786 = vld [vmem:[#allocation12] sm:$0xf]
        %v1787 = vld [vmem:[#allocation12 + $0x4] sm:$0xf]
        %v1788 = vld [vmem:[#allocation12 + $0x8] sm:$0xf]
        %v1789 = vld [vmem:[#allocation12 + $0xc] sm:$0xf]
        %v1790 = vld [vmem:[#allocation12 + $0x10] sm:$0xf]
        %v1791 = vld [vmem:[#allocation12 + $0x14] sm:$0xf]
        %v1792 = vld [vmem:[#allocation12 + $0x18] sm:$0xf]
        %v1793 = vld [vmem:[#allocation12 + $0x1c] sm:$0xf]
        %v1794 = vld [vmem:[#allocation12 + $0x20] sm:$0xf]
        %v1795 = vld [vmem:[#allocation12 + $0x24] sm:$0xf]
        %v1796 = vld [vmem:[#allocation12 + $0x28] sm:$0xf]
        %v1797 = vld [vmem:[#allocation12 + $0x2c] sm:$0xf]
        %v1798 = vld [vmem:[#allocation12 + $0x30] sm:$0xf]
        %v1799 = vld [vmem:[#allocation12 + $0x34] sm:$0xf]
        %v1800 = vld [vmem:[#allocation12 + $0x38] sm:$0xf]
        %v1801 = vld [vmem:[#allocation12 + $0x3c] sm:$0xf]
        %v1802 = vld [vmem:[%s8] sm:$0x1]
        %v1804 = vlaneseq
        %v1805 = vshrl.u32 %v1804, 7
        %v1806 = vsub.s32 0, %v1805
        %v1807 = vrot.slane %v1802, %v1806
        %v1825 = vunpack.c.l.b16 %v1786
        %v1826 = vunpack.c.l.b16 %v1787
        %v1827 = vunpack.c.l.b16 %v1788
        %v1828 = vunpack.c.l.b16 %v1789
        %v1829 = vunpack.c.l.b16 %v1790
        %v1830 = vunpack.c.l.b16 %v1791
        %v1831 = vunpack.c.l.b16 %v1792
        %v1832 = vunpack.c.l.b16 %v1793
        %v1833 = vunpack.c.l.b16 %v1794
        %v1834 = vunpack.c.l.b16 %v1795
        %v1835 = vunpack.c.l.b16 %v1796
        %v1836 = vunpack.c.l.b16 %v1797
        %v1837 = vunpack.c.l.b16 %v1798
        %v1838 = vunpack.c.l.b16 %v1799
        %v1839 = vunpack.c.l.b16 %v1800
        %v1840 = vunpack.c.l.b16 %v1801
        %v1841 = vpack.c.b16 %v1826, %v1825
        %v1842 = vpack.c.b16 %v1828, %v1827
        %v1843 = vpack.c.b16 %v1830, %v1829
        %v1844 = vpack.c.b16 %v1832, %v1831
        %v1845 = vpack.c.b16 %v1834, %v1833
        %v1846 = vpack.c.b16 %v1836, %v1835
        %v1847 = vpack.c.b16 %v1838, %v1837
        %v1848 = vpack.c.b16 %v1840, %v1839
        %1857 = vmatprep.subr.bf16.mxu0 0
        %1858 = vmatpush1.bf16.msra.mxu0 %v1841
        %1859 = vmatprep.subr.bf16.mxu0 0
        %1860 = vmatpush1.bf16.msra.mxu0 %v1842
        %1861 = vmatprep.subr.bf16.mxu0 0
        %1862 = vmatpush1.bf16.msra.mxu0 %v1843
        %1863 = vmatprep.subr.bf16.mxu0 0
        %1864 = vmatpush1.bf16.msra.mxu0 %v1844
        %1865 = vmatprep.subr.bf16.mxu0 0
        %1866 = vmatpush1.bf16.msra.mxu0 %v1845
        %1867 = vmatprep.subr.bf16.mxu0 0
        %1868 = vmatpush1.bf16.msra.mxu0 %v1846
        %1869 = vmatprep.subr.bf16.mxu0 0
        %1870 = vmatpush1.bf16.msra.mxu0 %v1847
        %1871 = vmatprep.subr.bf16.mxu0 0
        %1872 = vmatpush1.bf16.msra.mxu0 %v1848
        %1873 = vmatprep.subr.bf16.mxu0 0
        %1874 = vmatpush1.bf16.msra.mxu0 0
        %1875 = vmatprep.subr.bf16.mxu0 0
        %1876 = vmatpush1.bf16.msra.mxu0 0
        %1877 = vmatprep.subr.bf16.mxu0 0
        %1878 = vmatpush1.bf16.msra.mxu0 0
        %1879 = vmatprep.subr.bf16.mxu0 0
        %1880 = vmatpush1.bf16.msra.mxu0 0
        %1881 = vmatprep.subr.bf16.mxu0 0
        %1882 = vmatpush1.bf16.msra.mxu0 0
        %1883 = vmatprep.subr.bf16.mxu0 0
        %1884 = vmatpush1.bf16.msra.mxu0 0
        %1885 = vmatprep.subr.bf16.mxu0 0
        %1886 = vmatpush1.bf16.msra.mxu0 0
        %1887 = vmatprep.subr.bf16.mxu0 0
        %1888 = vmatpush1.bf16.msra.mxu0 0
        %1889 = vmatprep.mubr.bf16.mxu0 0
        %1890 = vmatmul.mubr.bf16.gmra.mrb[0].mxu0 %v1784
        %v1891 = vpop.f32.mrb[0].mxu0
        %v1892 = vadd.f32 %v1807, %v1891
        %v1893 = vpop.f32.mrb[0].mxu0
        %v1894 = vpop.f32.mrb[0].mxu0
        %v1895 = vadd.f32 %v1807, %v1894
        %v1896 = vpop.f32.mrb[0].mxu0
        %1897 = vmatprep.mubr.bf16.mxu0 0
        %1898 = vmatmul.mubr.bf16.gmra.mrb[0].mxu0 %v1785
        %v1899 = vpop.f32.mrb[0].mxu0
        %v1900 = vadd.f32 %v1807, %v1899
        %v1901 = vpop.f32.mrb[0].mxu0
        %v1902 = vpop.f32.mrb[0].mxu0
        %v1903 = vadd.f32 %v1807, %v1902
        %v1904 = vpop.f32.mrb[0].mxu0
        %1905 = vdwg.mxu0
        %v1906 = vadd.f32 %v1892, %v527
        %v1907 = vadd.f32 %v1895, %v528
        %v1908 = vadd.f32 %v1900, %v529
        %v1909 = vadd.f32 %v1903, %v530
        %v1910 = vmax.f32 %v1906, 0.0
        %v1911 = vmax.f32 %v1907, 0.0
        %v1912 = vmax.f32 %v1908, 0.0
        %v1913 = vmax.f32 %v1909, 0.0
        %1914 = vst [vmem:[%s515] sm:$0xff] %v1910
        %1915 = vst [vmem:[%s515 + $0x8] sm:$0xff] %v1911
        %1916 = vst [vmem:[%s515 + $0x10] sm:$0xff] %v1912
        %1917 = vst [vmem:[%s515 + $0x18] sm:$0xff] %v1913
        %s1918 = sand.u32 %s279, 1
        %s1919 = scalar_lea.sflag [#allocation5], %s1918
        %s1920 = sand.u32 %s279, 1
        %s1921 = smul.addr %s1920, 32
        %s1922 = scalar_lea.vmem [#allocation14], %s1921
        // Predicated region
        $region81: #{tpu_custom_call.1} parent=55 // pred_check
          %p1923 = pneg %p289
        $region82: #{tpu_custom_call.1} parent=55 // pred_check_branch
          %1925 = sbr.rel (%p1923) target = $region84
        $region83: #{tpu_custom_call.1} parent=55 // pred_region
          %s1926 = smul.u32 4, %s36
          %s1928 = ssub.s32 512, 512
          %1929 = vsyncadd %s1919, %s1928
          %s1930 = smul.addr %s35, 8
          %s1931 = sadd.s32 %s1926, %s1930
          %s1932 = smul.addr %s1931, 128
          %s1933 = scalar_lea.hbm %s9, %s1932
          %s1934 = sshll.u32 %s1922, 4
          %s1935 = int_to_ptr.vmem [resolvable:$true] %s1934
          %1940 = dma.vmem_to_hbm [thread:$0]  %s1935, 512, %s1933, %s1919, 128, 128, 8
        $region84: #{tpu_custom_call.1} parent=55 // pred_fallthru
          _
      $region56: #{tpu_custom_call.1} parent=5 // pred_fallthru
        _
      %p1941 = scmp.le.s32.totalorder 2, %s26
      // Predicated region
      $region85: #{tpu_custom_call.1} parent=5 // pred_check
        %p1942 = pneg %p1941
      $region86: #{tpu_custom_call.1} parent=5 // pred_check_branch
        %1944 = sbr.rel (%p1942) target = $region88
      $region87: #{tpu_custom_call.1} parent=5 // pred_region
        %s1945 = ssub.s32 %s26, 2
        // Predicated region
        $region89: #{tpu_custom_call.1} parent=87 // pred_check
          %p1946 = pneg %p295
        $region90: #{tpu_custom_call.1} parent=87 // pred_check_branch
          %1948 = sbr.rel (%p1946) target = $region92
        $region91: #{tpu_custom_call.1} parent=87 // pred_region
          %s1949 = sand.u32 %s280, 1
          %s1950 = scalar_lea.sflag [#allocation5], %s1949
          %s1951 = sand.u32 %s280, 1
          %s1952 = smul.addr %s1951, 32
          %s1953 = scalar_lea.vmem [#allocation14], %s1952
          %1954 = dma.done %s1950, 512
        $region92: #{tpu_custom_call.1} parent=87 // pred_fallthru
          _
      $region88: #{tpu_custom_call.1} parent=5 // pred_fallthru
        _
    $region6: #{tpu_custom_call.1} parent=1 // loop_footer
      %s30 = sadd.s32 1, %s26
    $region7: #{tpu_custom_call.1} parent=1 // loop_footer_branch
      %25 = sbr.rel target = $region3
    $region8: #{tpu_custom_call.1} parent=1 // loop_exit
      _
    %1955 = vsyncpa [#allocation4], 1
    %s1956 = scalar_lea.sflag [#allocation4], 1
    %1957 = vsyncpa %s1956, 1
    %1958 = vsyncpa [#allocation7], 1
    %s1959 = scalar_lea.sflag [#allocation7], 1
    %1960 = vsyncpa %s1959, 1
    %1961 = vsyncpa [#allocation10], 1
    %1962 = vsyncpa [#allocation13], 1
    %1963 = vsyncpa [#allocation5], 1
    %s1964 = scalar_lea.sflag [#allocation5], 1
    %1965 = vsyncpa %s1964, 1

</llo_original>
